<compile_context>
chip_gen: v7x
topology: tpu7x:2x2x1
jax: 0.10.0
libtpu: 0.0.40
codegen_flags: <defaults>
</compile_context>

<pallas_src>
import functools
import math

import jax
import jax.numpy as jnp
from jax.experimental import pallas as pl
from jax.experimental.pallas import tpu as pltpu


def _round_up(n, m):
    return ((n + m - 1) // m) * m


def _pad_axis(a, axis, target):
    pad = target - a.shape[axis]
    if pad == 0:
        return a
    widths = [(0, 0)] * a.ndim
    widths[axis] = (0, pad)
    return jnp.pad(a, widths)


# ---------------------------------------------------------------------------
# Pallas kernel: one (batch, T-tile) per grid step.
# ---------------------------------------------------------------------------
def _attention_kernel(x_ref, tgt_ref, keys_ref, vals_ref,
                      w_in_ref, b_in_ref, w_out_ref, b_out_ref, smask_ref,
                      out_ref, attn_ref, *, use_mask):
    # Per-step shapes:
    #   x_ref    : (1, tT, Cp) bf16     tgt_ref : (1, tT, Ep) bf16
    #   keys_ref : (1, Ep, Sp) bf16     vals_ref: (1, Sp, Ep) bf16
    #   w_in_ref : (Cp, Ep) bf16        b_in_ref : (1, Ep) f32
    #   w_out_ref: (Ep, Cp) bf16 (pre-scaled by sqrt(S))   b_out_ref: (1, Cp) f32
    #   smask_ref: (1, Sp) f32 additive source-pad mask (0 valid / -1e30 pad)
    #   out_ref  : (1, tT, Cp)          attn_ref : (1, tT, Sp)
    sqrt_half = jnp.float32(math.sqrt(0.5))

    x_bf = x_ref[0]                                   # (tT, Cp) bf16, MXU input
    residual = x_bf.astype(jnp.float32)               # residual math in f32
    tgt = tgt_ref[0].astype(jnp.float32)              # (tT, Ep) f32

    # h = (in_projection(x) + target_embedding) * sqrt(0.5)      [f32]
    h = jnp.dot(x_bf, w_in_ref[...], preferred_element_type=jnp.float32)
    h = (h + b_in_ref[...] + tgt) * sqrt_half         # (tT, Ep)

    # attention logits = h @ keys  (bf16 MXU, f32 accumulation)
    scores = jnp.dot(h.astype(jnp.bfloat16), keys_ref[0],
                     preferred_element_type=jnp.float32)           # (tT, Sp)
    if use_mask:
        # Single VPU add; keep the mask/softmax path in f32 (never bf16).
        scores = scores + smask_ref[...]

    # softmax over the source dim (== F.softmax(x.view(B*T, S), dim=1)), f32.
    m = jnp.max(scores, axis=-1, keepdims=True)
    e = jnp.exp(scores - m)
    denom = jnp.sum(e, axis=-1, keepdims=True)
    p = e * pl.reciprocal(denom, approx=True)          # rows sum to 1 ± ~1e-3
    attn_ref[0] = p.astype(attn_ref.dtype)

    # context = attn @ values; the s*sqrt(1/s) scale is folded into w_out.
    ctx = jnp.dot(p.astype(jnp.bfloat16), vals_ref[0],
                  preferred_element_type=jnp.float32)              # (tT, Ep)

    # out = (out_projection(sqrt(S) * ctx) + residual) * sqrt(0.5)
    o = jnp.dot(ctx.astype(jnp.bfloat16), w_out_ref[...],
                preferred_element_type=jnp.float32)
    o = (o + b_out_ref[...] + residual) * sqrt_half
    out_ref[0] = o.astype(out_ref.dtype)


# ---------------------------------------------------------------------------
# VMEM accounting helpers (generation aware)
# ---------------------------------------------------------------------------
def _vmem_capacity_bytes():
    """Physical VMEM of the attached TPU; conservative 64 MiB (v7x) fallback."""
    try:
        cap = getattr(pltpu.get_tpu_info(), "vmem_capacity_bytes", None)
        if cap:
            return int(cap)
    except Exception:
        pass
    return 64 << 20


def _vmem_footprint(tT, Cp, Ep, Sp, out_bytes, attn_bytes, kv_bufs):
    """Per-step VMEM bytes: pipeline buffers + in-kernel f32 intermediates."""
    # x, tgt (bf16) and out, attn: streamed per T tile, double-buffered.
    stream = 2 * tT * (Cp * 2 + Ep * 2 + Cp * out_bytes + Sp * attn_bytes)
    # keys / values (bf16): single-buffered when pl.Buffered(1) is available.
    kv = kv_bufs * 2 * (Ep * Sp + Sp * Ep)
    # Projection weights (bf16), biases + mask (f32): small, double-buffered.
    wts = 2 * (2 * (Cp * Ep + Ep * Cp) + 4 * (Ep + Cp + Sp))
    # In-kernel f32 intermediates: residual/o (Cp), h/tgt/ctx (Ep), scores/e/p (Sp).
    inter = tT * (2 * Cp + 3 * Ep + 3 * Sp) * 4
    return stream + kv + wts + inter


def _kv_block_spec(block_shape, index_map, buffer_count):
    """keys/values only change at batch boundaries → request 1-deep buffering
    to free VMEM (important on v7x); fall back to the default if unsupported."""
    if buffer_count != 2 and hasattr(pl, "Buffered"):
        try:
            return pl.BlockSpec(block_shape, index_map,
                                pipeline_mode=pl.Buffered(buffer_count))
        except Exception:
            pass
    return pl.BlockSpec(block_shape, index_map)


# ---------------------------------------------------------------------------
# Wrapper
# ---------------------------------------------------------------------------
def attention_layer(x, target_embedding, encoder_keys, encoder_values,
                    w_in, b_in, w_out, b_out, *, t_tile=512,
                    out_dtype=None, attn_dtype=jnp.float32):
    """Pallas implementation of fconv AttentionLayer.forward.

    x               : (B, T, C)
    target_embedding: (B, T, E)
    encoder_keys    : (B, E, S)   == encoder_out[0]
    encoder_values  : (B, S, E)   == encoder_out[1]
    w_in  : (C, E)  effective (weight-normed) in_projection weight, transposed
    b_in  : (E,)
    w_out : (E, C)  effective out_projection weight, transposed
    b_out : (C,)
    Returns (out (B,T,C), attn_scores (B,T,S)).
    Note: attn rows sum to 1 only to ~1e-3 (EUP approximate reciprocal).
    """
    B, T, C = x.shape
    E = target_embedding.shape[-1]
    S = encoder_keys.shape[-1]
    f32, bf16 = jnp.float32, jnp.bfloat16
    out_dtype = x.dtype if out_dtype is None else out_dtype

    # Lane-dense / MXU-friendly padding targets.
    Cp = _round_up(C, 128)
    Ep = _round_up(E, 128)
    Sp = _round_up(S, 128)
    Tp8 = _round_up(T, 8)

    out_bytes = jnp.dtype(out_dtype).itemsize
    attn_bytes = jnp.dtype(attn_dtype).itemsize

    # Generation-aware budget (~56 MiB usable on v7x, ~100 MiB on v5e/v6e) and
    # adaptive T tile: largest of {512,256,...,16} whose honest footprint fits.
    phys = _vmem_capacity_bytes()
    budget = max(min(phys - (8 << 20), 100 << 20), 24 << 20)
    kv_bufs = 1 if hasattr(pl, "Buffered") else 2
    cands = [c for c in (512, 256, 128, 64, 32, 16) if c <= max(t_tile, 16)]
    tT = min(cands[-1], Tp8)
    for cand in cands:
        c = min(cand, Tp8)   # either a multiple of 16 or the full T extent
        if _vmem_footprint(c, Cp, Ep, Sp, out_bytes, attn_bytes, kv_bufs) <= budget:
            tT = c
            break
    Tp = _round_up(Tp8, tT)
    # TODO(synk): for very long encoder sequences (E*S too big for any tT to
    # fit in VMEM) add an S grid axis with an online-softmax accumulator
    # instead of holding the full Sp extent resident.

    # Cast BEFORE padding (half the bytes moved by the pad copies); _pad_axis
    # is a no-op when the dim is already aligned.
    x_p = _pad_axis(_pad_axis(x.astype(bf16), 2, Cp), 1, Tp)
    tgt_p = _pad_axis(_pad_axis(target_embedding.astype(bf16), 2, Ep), 1, Tp)
    keys_p = _pad_axis(_pad_axis(encoder_keys.astype(bf16), 1, Ep), 2, Sp)
    vals_p = _pad_axis(_pad_axis(encoder_values.astype(bf16), 1, Sp), 2, Ep)

    w_in_p = _pad_axis(_pad_axis(w_in.astype(bf16), 0, Cp), 1, Ep)
    b_in_p = _pad_axis(b_in.astype(f32).reshape(1, E), 1, Ep)
    # Fold the s * sqrt(1/s) == sqrt(S) context scale into the out-projection.
    scale = jnp.float32(S * math.sqrt(1.0 / S))
    w_out_p = _pad_axis(_pad_axis((w_out * scale).astype(bf16), 0, Ep), 1, Cp)
    b_out_p = _pad_axis(b_out.astype(f32).reshape(1, C), 1, Cp)

    # Precomputed additive source-padding mask (0 valid / -1e30 pad), f32.
    use_mask = Sp != S
    col = jnp.arange(Sp, dtype=jnp.int32).reshape(1, Sp)
    smask = jnp.where(col < S, 0.0, -1e30).astype(f32)

    grid = (B, Tp // tT)
    kernel = functools.partial(_attention_kernel, use_mask=use_mask)

    fp = _vmem_footprint(tT, Cp, Ep, Sp, out_bytes, attn_bytes, kv_bufs)
    vmem_limit = int(min(max(fp + (8 << 20), 32 << 20), phys - (4 << 20)))

    # Megacore: shard on the batch axis when possible so each core keeps its
    # own batch's keys/values/weights resident; only parallelize T when B==1.
    dims = ("parallel", "arbitrary") if B >= 2 else ("parallel", "parallel")

    out_shapes = (
        jax.ShapeDtypeStruct((B, Tp, Cp), out_dtype),
        jax.ShapeDtypeStruct((B, Tp, Sp), attn_dtype),
    )

    def _call(kv_buffer_count):
        grid_spec = pltpu.PrefetchScalarGridSpec(
            num_scalar_prefetch=0,
            grid=grid,
            in_specs=[
                pl.BlockSpec((1, tT, Cp), lambda b, t: (b, t, 0)),   # x (bf16)
                pl.BlockSpec((1, tT, Ep), lambda b, t: (b, t, 0)),   # tgt (bf16)
                _kv_block_spec((1, Ep, Sp), lambda b, t: (b, 0, 0),
                               kv_buffer_count),                     # keys
                _kv_block_spec((1, Sp, Ep), lambda b, t: (b, 0, 0),
                               kv_buffer_count),                     # values
                pl.BlockSpec((Cp, Ep), lambda b, t: (0, 0)),         # w_in
                pl.BlockSpec((1, Ep), lambda b, t: (0, 0)),          # b_in
                pl.BlockSpec((Ep, Cp), lambda b, t: (0, 0)),         # w_out
                pl.BlockSpec((1, Cp), lambda b, t: (0, 0)),          # b_out
                pl.BlockSpec((1, Sp), lambda b, t: (0, 0)),          # smask
            ],
            out_specs=[
                pl.BlockSpec((1, tT, Cp), lambda b, t: (b, t, 0)),   # out
                pl.BlockSpec((1, tT, Sp), lambda b, t: (b, t, 0)),   # attn
            ],
        )
        return pl.pallas_call(
            kernel,
            out_shape=out_shapes,
            grid_spec=grid_spec,
            compiler_params=pltpu.CompilerParams(
                dimension_semantics=dims,
                vmem_limit_bytes=vmem_limit),
        )(x_p, tgt_p, keys_p, vals_p, w_in_p, b_in_p, w_out_p, b_out_p, smask)

    if kv_bufs == 1:
        try:
            out_p, attn_p = _call(1)
        except Exception:
            # Installed Pallas rejected single-buffering; default 2-deep works.
            out_p, attn_p = _call(2)
    else:
        out_p, attn_p = _call(2)

    # Skip the wrapper-side slice round trip entirely when already aligned.
    out = out_p if (Tp == T and Cp == C) else out_p[:, :T, :C]
    attn = attn_p if (Tp == T and Sp == S) else attn_p[:, :T, :S]
    return out, attn


# ---------------------------------------------------------------------------
# Deterministic parameter construction (mirrors the module's __init__).
# ---------------------------------------------------------------------------
def make_weight_norm_linear(key, in_features, out_features, dropout=0.0):
    """Mimics fairseq's weight-normalized Linear init.

    v ~ Normal(0, sqrt((1 - dropout) / in_features)), bias = 0.
    weight_norm(dim=0): W = g * v / ||v||_row with g init'd to ||v||_row, so
    the effective initial weight equals v; we keep the reparam explicitly.
    Returns (W_eff_T, b) with W_eff_T of shape (in_features, out_features).
    """
    std = math.sqrt((1.0 - dropout) / in_features)
    v = jax.random.normal(key, (out_features, in_features), jnp.float32) * std
    row_norm = jnp.sqrt(jnp.sum(v * v, axis=1, keepdims=True))
    g = row_norm
    w_eff = g * v / row_norm                       # == v at init
    b = jnp.zeros((out_features,), jnp.float32)
    return w_eff.T, b                              # transposed for x @ W


# ---------------------------------------------------------------------------
# References
# ---------------------------------------------------------------------------
def reference_f32(x, tgt, keys, vals, w_in, b_in, w_out, b_out):
    """Plain-JAX, full-f32 replica of the PyTorch forward."""
    h = (x @ w_in + b_in + tgt) * math.sqrt(0.5)
    scores = jnp.einsum('bte,bes->bts', h, keys)
    attn = jax.nn.softmax(scores, axis=-1)
    s = vals.shape[1]
    ctx = jnp.einsum('bts,bse->bte', attn, vals) * (s * math.sqrt(1.0 / s))
    out = (ctx @ w_out + b_out + x) * math.sqrt(0.5)
    return out, attn


def reference_bf16(x, tgt, keys, vals, w_in, b_in, w_out, b_out):
    """Reference with the kernel's numerics: x/tgt/keys/vals/weights quantized
    to bf16, matmuls with f32 accumulation, sqrt(S) folded into a bf16 w_out
    (exact reciprocal in the softmax)."""
    bf16, f32 = jnp.bfloat16, jnp.float32
    s = vals.shape[1]
    x_q = x.astype(bf16)
    tgt_q = tgt.astype(bf16).astype(f32)
    w_out_s = (w_out * jnp.float32(s * math.sqrt(1.0 / s))).astype(bf16)
    h = jnp.einsum('btc,ce->bte', x_q, w_in.astype(bf16),
                   preferred_element_type=f32)
    h = (h + b_in + tgt_q) * math.sqrt(0.5)
    scores = jnp.einsum('bte,bes->bts', h.astype(bf16), keys.astype(bf16),
                        preferred_element_type=f32)
    attn = jax.nn.softmax(scores, axis=-1)
    ctx = jnp.einsum('bts,bse->bte', attn.astype(bf16), vals.astype(bf16),
                     preferred_element_type=f32)
    out = (jnp.einsum('bte,ec->btc', ctx.astype(bf16), w_out_s,
                      preferred_element_type=f32)
           + b_out + x_q.astype(f32)) * math.sqrt(0.5)
    return out, attn


if __name__ == "__main__":
    # Small, module-consistent shapes.
    B, T, S = 2, 8, 16          # batch, target length, source length
    C, E = 32, 64               # conv_channels, embed_dim

    key = jax.random.PRNGKey(0)
    k_x, k_tgt, k_keys, k_vals, k_win, k_wout = jax.random.split(key, 6)

    x = jax.random.normal(k_x, (B, T, C), jnp.float32)
    target_embedding = jax.random.normal(k_tgt, (B, T, E), jnp.float32)
    encoder_keys = jax.random.normal(k_keys, (B, E, S), jnp.float32)
    encoder_values = jax.random.normal(k_vals, (B, S, E), jnp.float32)

    w_in, b_in = make_weight_norm_linear(k_win, C, E)     # in_projection
    w_out, b_out = make_weight_norm_linear(k_wout, E, C)  # out_projection

    out, attn = attention_layer(x, target_embedding, encoder_keys,
                                encoder_values, w_in, b_in, w_out, b_out)
    out = jax.block_until_ready(out)
    attn = jax.block_until_ready(attn)

    # (1) Tight check vs a JAX reference with matching numerics
    #     (bf16 inputs, f32 accumulation); slack covers the approx reciprocal.
    ref_out_b, ref_attn_b = reference_bf16(
        x, target_embedding, encoder_keys, encoder_values,
        w_in, b_in, w_out, b_out)
    assert jnp.allclose(out, ref_out_b, atol=2e-2, rtol=2e-2), "out vs bf16 ref"
    assert jnp.allclose(attn, ref_attn_b, atol=2e-2, rtol=2e-2), "attn vs bf16 ref"

    # (2) Loose check vs the full-f32 module semantics (documents expected
    #     bf16-matmul drift relative to the PyTorch f32 forward).
    ref_out, ref_attn = reference_f32(
        x, target_embedding, encoder_keys, encoder_values,
        w_in, b_in, w_out, b_out)
    assert jnp.allclose(out, ref_out, atol=1.5e-1, rtol=1.5e-1), "out vs f32 ref"
    assert jnp.allclose(attn, ref_attn, atol=1e-1, rtol=1e-1), "attn vs f32 ref"

    print("KERNEL_OK")
</pallas_src>

<mosaic_0001>
module attributes {stable_mosaic.version = 11 : i64} {
  func.func @_attention_kernel(%arg0: i32, %arg1: i32, %arg2: memref<1x8x128xbf16, #tpu.memory_space<vmem>>, %arg3: memref<1x8x128xbf16, #tpu.memory_space<vmem>>, %arg4: memref<1x128x128xbf16, #tpu.memory_space<vmem>>, %arg5: memref<1x128x128xbf16, #tpu.memory_space<vmem>>, %arg6: memref<128x128xbf16, #tpu.memory_space<vmem>>, %arg7: memref<1x128xf32, #tpu.memory_space<vmem>>, %arg8: memref<128x128xbf16, #tpu.memory_space<vmem>>, %arg9: memref<1x128xf32, #tpu.memory_space<vmem>>, %arg10: memref<1x128xf32, #tpu.memory_space<vmem>>, %arg11: memref<1x8x128xf32, #tpu.memory_space<vmem>>, %arg12: memref<1x8x128xf32, #tpu.memory_space<vmem>>) attributes {dimension_semantics = [#tpu.dimension_semantics<parallel>, #tpu.dimension_semantics<arbitrary>], iteration_bounds = array<i64: 2, 1>, scalar_prefetch = 0 : i64, scratch_operands = 0 : i64, tpu.core_type = #tpu.core_type<tc>, window_params = [{transform_indices = @transform_0, window_bounds = array<i64: 1, 8, 128>}, {transform_indices = @transform_1, window_bounds = array<i64: 1, 8, 128>}, {pipeline_mode = #tpu.pipeline_mode<synchronous>, transform_indices = @transform_2, window_bounds = array<i64: 1, 128, 128>}, {pipeline_mode = #tpu.pipeline_mode<synchronous>, transform_indices = @transform_3, window_bounds = array<i64: 1, 128, 128>}, {pipeline_mode = #tpu.pipeline_mode<synchronous>, transform_indices = @transform_4, window_bounds = array<i64: 128, 128>}, {pipeline_mode = #tpu.pipeline_mode<synchronous>, transform_indices = @transform_5, window_bounds = array<i64: 1, 128>}, {pipeline_mode = #tpu.pipeline_mode<synchronous>, transform_indices = @transform_6, window_bounds = array<i64: 128, 128>}, {pipeline_mode = #tpu.pipeline_mode<synchronous>, transform_indices = @transform_7, window_bounds = array<i64: 1, 128>}, {pipeline_mode = #tpu.pipeline_mode<synchronous>, transform_indices = @transform_8, window_bounds = array<i64: 1, 128>}, {transform_indices = @transform_9, window_bounds = array<i64: 1, 8, 128>}, {transform_indices = @transform_10, window_bounds = array<i64: 1, 8, 128>}]} {
    %c0 = arith.constant 0 : index
    %c0_0 = arith.constant 0 : index
    %c0_1 = arith.constant 0 : index
    %0 = vector.load %arg2[%c0, %c0_0, %c0_1] : memref<1x8x128xbf16, #tpu.memory_space<vmem>>, vector<1x8x128xbf16>
    %1 = vector.shape_cast %0 : vector<1x8x128xbf16> to vector<8x128xbf16>
    %2 = arith.extf %1 : vector<8x128xbf16> to vector<8x128xf32>
    %c0_2 = arith.constant 0 : index
    %c0_3 = arith.constant 0 : index
    %c0_4 = arith.constant 0 : index
    %3 = vector.load %arg3[%c0_2, %c0_3, %c0_4] : memref<1x8x128xbf16, #tpu.memory_space<vmem>>, vector<1x8x128xbf16>
    %4 = vector.shape_cast %3 : vector<1x8x128xbf16> to vector<8x128xbf16>
    %5 = arith.extf %4 : vector<8x128xbf16> to vector<8x128xf32>
    %c0_5 = arith.constant 0 : index
    %c0_6 = arith.constant 0 : index
    %6 = vector.load %arg6[%c0_5, %c0_6] : memref<128x128xbf16, #tpu.memory_space<vmem>>, vector<128x128xbf16>
    %cst = arith.constant dense<0.000000e+00> : vector<8x128xf32>
    %7 = tpu.matmul %1, %6, %cst {dimension_numbers = #tpu.dot_dimension_numbers<[1], [0], [0], [1], [0, 0, 1, 1], [], []>} : vector<8x128xbf16>, vector<128x128xbf16>, vector<8x128xf32> -> vector<8x128xf32>
    %c0_7 = arith.constant 0 : index
    %c0_8 = arith.constant 0 : index
    %8 = vector.load %arg7[%c0_7, %c0_8] : memref<1x128xf32, #tpu.memory_space<vmem>>, vector<1x128xf32>
    %9 = vector.broadcast %8 : vector<1x128xf32> to vector<8x128xf32>
    %10 = arith.addf %7, %9 : vector<8x128xf32>
    %11 = arith.addf %10, %5 : vector<8x128xf32>
    %cst_9 = arith.constant 0.707106769 : f32
    %12 = vector.broadcast %cst_9 : f32 to vector<8x128xf32>
    %13 = arith.mulf %11, %12 : vector<8x128xf32>
    %14 = arith.truncf %13 : vector<8x128xf32> to vector<8x128xbf16>
    %c0_10 = arith.constant 0 : index
    %c0_11 = arith.constant 0 : index
    %c0_12 = arith.constant 0 : index
    %15 = vector.load %arg4[%c0_10, %c0_11, %c0_12] : memref<1x128x128xbf16, #tpu.memory_space<vmem>>, vector<1x128x128xbf16>
    %16 = vector.shape_cast %15 : vector<1x128x128xbf16> to vector<128x128xbf16>
    %cst_13 = arith.constant dense<0.000000e+00> : vector<8x128xf32>
    %17 = tpu.matmul %14, %16, %cst_13 {dimension_numbers = #tpu.dot_dimension_numbers<[1], [0], [0], [1], [0, 0, 1, 1], [], []>} : vector<8x128xbf16>, vector<128x128xbf16>, vector<8x128xf32> -> vector<8x128xf32>
    %c0_14 = arith.constant 0 : index
    %c0_15 = arith.constant 0 : index
    %18 = vector.load %arg10[%c0_14, %c0_15] : memref<1x128xf32, #tpu.memory_space<vmem>>, vector<1x128xf32>
    %19 = vector.broadcast %18 : vector<1x128xf32> to vector<8x128xf32>
    %20 = arith.addf %17, %19 : vector<8x128xf32>
    %cst_16 = arith.constant dense<0xFF800000> : vector<8xf32>
    %21 = vector.multi_reduction <maximumf>, %20, %cst_16 [1] : vector<8x128xf32> to vector<8xf32>
    %22 = vector.shape_cast %21 : vector<8xf32> to vector<8x1xf32>
    %23 = vector.broadcast %22 : vector<8x1xf32> to vector<8x128xf32>
    %24 = arith.subf %20, %23 : vector<8x128xf32>
    %25 = math.exp %24 : vector<8x128xf32>
    %cst_17 = arith.constant dense<0.000000e+00> : vector<8xf32>
    %26 = vector.multi_reduction <add>, %25, %cst_17 [1] : vector<8x128xf32> to vector<8xf32>
    %27 = vector.shape_cast %26 : vector<8xf32> to vector<8x1xf32>
    %28 = tpu.reciprocal %27 {approx = true} : vector<8x1xf32> -> vector<8x1xf32>
    %29 = vector.broadcast %28 : vector<8x1xf32> to vector<8x128xf32>
    %30 = arith.mulf %25, %29 : vector<8x128xf32>
    %c0_18 = arith.constant 0 : index
    %c0_19 = arith.constant 0 : index
    %c0_20 = arith.constant 0 : index
    %31 = vector.load %arg12[%c0_18, %c0_19, %c0_20] : memref<1x8x128xf32, #tpu.memory_space<vmem>>, vector<1x8x128xf32>
    %32 = vector.shape_cast %31 : vector<1x8x128xf32> to vector<8x128xf32>
    %33 = vector.shape_cast %30 : vector<8x128xf32> to vector<1x8x128xf32>
    tpu.vector_store %arg12[%c0_18, %c0_19, %c0_20], %33 {strides = array<i32>} : memref<1x8x128xf32, #tpu.memory_space<vmem>>, vector<1x8x128xf32>,
    %34 = arith.truncf %30 : vector<8x128xf32> to vector<8x128xbf16>
    %c0_21 = arith.constant 0 : index
    %c0_22 = arith.constant 0 : index
    %c0_23 = arith.constant 0 : index
    %35 = vector.load %arg5[%c0_21, %c0_22, %c0_23] : memref<1x128x128xbf16, #tpu.memory_space<vmem>>, vector<1x128x128xbf16>
    %36 = vector.shape_cast %35 : vector<1x128x128xbf16> to vector<128x128xbf16>
    %cst_24 = arith.constant dense<0.000000e+00> : vector<8x128xf32>
    %37 = tpu.matmul %34, %36, %cst_24 {dimension_numbers = #tpu.dot_dimension_numbers<[1], [0], [0], [1], [0, 0, 1, 1], [], []>} : vector<8x128xbf16>, vector<128x128xbf16>, vector<8x128xf32> -> vector<8x128xf32>
    %38 = arith.truncf %37 : vector<8x128xf32> to vector<8x128xbf16>
    %c0_25 = arith.constant 0 : index
    %c0_26 = arith.constant 0 : index
    %39 = vector.load %arg8[%c0_25, %c0_26] : memref<128x128xbf16, #tpu.memory_space<vmem>>, vector<128x128xbf16>
    %cst_27 = arith.constant dense<0.000000e+00> : vector<8x128xf32>
    %40 = tpu.matmul %38, %39, %cst_27 {dimension_numbers = #tpu.dot_dimension_numbers<[1], [0], [0], [1], [0, 0, 1, 1], [], []>} : vector<8x128xbf16>, vector<128x128xbf16>, vector<8x128xf32> -> vector<8x128xf32>
    %c0_28 = arith.constant 0 : index
    %c0_29 = arith.constant 0 : index
    %41 = vector.load %arg9[%c0_28, %c0_29] : memref<1x128xf32, #tpu.memory_space<vmem>>, vector<1x128xf32>
    %42 = vector.broadcast %41 : vector<1x128xf32> to vector<8x128xf32>
    %43 = arith.addf %40, %42 : vector<8x128xf32>
    %44 = arith.addf %43, %2 : vector<8x128xf32>
    %cst_30 = arith.constant 0.707106769 : f32
    %45 = vector.broadcast %cst_30 : f32 to vector<8x128xf32>
    %46 = arith.mulf %44, %45 : vector<8x128xf32>
    %c0_31 = arith.constant 0 : index
    %c0_32 = arith.constant 0 : index
    %c0_33 = arith.constant 0 : index
    %47 = vector.load %arg11[%c0_31, %c0_32, %c0_33] : memref<1x8x128xf32, #tpu.memory_space<vmem>>, vector<1x8x128xf32>
    %48 = vector.shape_cast %47 : vector<1x8x128xf32> to vector<8x128xf32>
    %49 = vector.shape_cast %46 : vector<8x128xf32> to vector<1x8x128xf32>
    tpu.vector_store %arg11[%c0_31, %c0_32, %c0_33], %49 {strides = array<i32>} : memref<1x8x128xf32, #tpu.memory_space<vmem>>, vector<1x8x128xf32>,
    return
  }
  func.func @transform_0(%arg0: i32, %arg1: i32) -> (i32, i32, i32) {
    %c0_i32 = arith.constant 0 : i32
    %c0_i32_0 = arith.constant 0 : i32
    return %arg0, %arg1, %c0_i32 : i32, i32, i32
  }
  func.func @transform_1(%arg0: i32, %arg1: i32) -> (i32, i32, i32) {
    %c0_i32 = arith.constant 0 : i32
    %c0_i32_0 = arith.constant 0 : i32
    return %arg0, %arg1, %c0_i32 : i32, i32, i32
  }
  func.func @transform_2(%arg0: i32, %arg1: i32) -> (i32, i32, i32) {
    %c0_i32 = arith.constant 0 : i32
    %c0_i32_0 = arith.constant 0 : i32
    %c0_i32_1 = arith.constant 0 : i32
    return %arg0, %c0_i32, %c0_i32_0 : i32, i32, i32
  }
  func.func @transform_3(%arg0: i32, %arg1: i32) -> (i32, i32, i32) {
    %c0_i32 = arith.constant 0 : i32
    %c0_i32_0 = arith.constant 0 : i32
    %c0_i32_1 = arith.constant 0 : i32
    return %arg0, %c0_i32, %c0_i32_0 : i32, i32, i32
  }
  func.func @transform_4(%arg0: i32, %arg1: i32) -> (i32, i32) {
    %c0_i32 = arith.constant 0 : i32
    %c0_i32_0 = arith.constant 0 : i32
    %c0_i32_1 = arith.constant 0 : i32
    return %c0_i32, %c0_i32_0 : i32, i32
  }
  func.func @transform_5(%arg0: i32, %arg1: i32) -> (i32, i32) {
    %c0_i32 = arith.constant 0 : i32
    %c0_i32_0 = arith.constant 0 : i32
    %c0_i32_1 = arith.constant 0 : i32
    return %c0_i32, %c0_i32_0 : i32, i32
  }
  func.func @transform_6(%arg0: i32, %arg1: i32) -> (i32, i32) {
    %c0_i32 = arith.constant 0 : i32
    %c0_i32_0 = arith.constant 0 : i32
    %c0_i32_1 = arith.constant 0 : i32
    return %c0_i32, %c0_i32_0 : i32, i32
  }
  func.func @transform_7(%arg0: i32, %arg1: i32) -> (i32, i32) {
    %c0_i32 = arith.constant 0 : i32
    %c0_i32_0 = arith.constant 0 : i32
    %c0_i32_1 = arith.constant 0 : i32
    return %c0_i32, %c0_i32_0 : i32, i32
  }
  func.func @transform_8(%arg0: i32, %arg1: i32) -> (i32, i32) {
    %c0_i32 = arith.constant 0 : i32
    %c0_i32_0 = arith.constant 0 : i32
    %c0_i32_1 = arith.constant 0 : i32
    return %c0_i32, %c0_i32_0 : i32, i32
  }
  func.func @transform_9(%arg0: i32, %arg1: i32) -> (i32, i32, i32) {
    %c0_i32 = arith.constant 0 : i32
    %c0_i32_0 = arith.constant 0 : i32
    return %arg0, %arg1, %c0_i32 : i32, i32, i32
  }
  func.func @transform_10(%arg0: i32, %arg1: i32) -> (i32, i32, i32) {
    %c0_i32 = arith.constant 0 : i32
    %c0_i32_0 = arith.constant 0 : i32
    return %arg0, %arg1, %c0_i32 : i32, i32, i32
  }
}

module attributes {stable_mosaic.version = 11 : i64} {
  func.func @_attention_kernel(%arg0: i32, %arg1: i32, %arg2: memref<1x8x128xbf16, #tpu.memory_space<vmem>>, %arg3: memref<1x8x128xbf16, #tpu.memory_space<vmem>>, %arg4: memref<1x128x128xbf16, #tpu.memory_space<vmem>>, %arg5: memref<1x128x128xbf16, #tpu.memory_space<vmem>>, %arg6: memref<128x128xbf16, #tpu.memory_space<vmem>>, %arg7: memref<1x128xf32, #tpu.memory_space<vmem>>, %arg8: memref<128x128xbf16, #tpu.memory_space<vmem>>, %arg9: memref<1x128xf32, #tpu.memory_space<vmem>>, %arg10: memref<1x128xf32, #tpu.memory_space<vmem>>, %arg11: memref<1x8x128xf32, #tpu.memory_space<vmem>>, %arg12: memref<1x8x128xf32, #tpu.memory_space<vmem>>) attributes {dimension_semantics = [#tpu.dimension_semantics<parallel>, #tpu.dimension_semantics<arbitrary>], iteration_bounds = array<i64: 2, 1>, scalar_prefetch = 0 : i64, scratch_operands = 0 : i64, tpu.core_type = #tpu.core_type<tc>, window_params = [{transform_indices = @transform_0, window_bounds = array<i64: 1, 8, 128>}, {transform_indices = @transform_1, window_bounds = array<i64: 1, 8, 128>}, {transform_indices = @transform_2, window_bounds = array<i64: 1, 128, 128>}, {transform_indices = @transform_3, window_bounds = array<i64: 1, 128, 128>}, {pipeline_mode = #tpu.pipeline_mode<synchronous>, transform_indices = @transform_4, window_bounds = array<i64: 128, 128>}, {pipeline_mode = #tpu.pipeline_mode<synchronous>, transform_indices = @transform_5, window_bounds = array<i64: 1, 128>}, {pipeline_mode = #tpu.pipeline_mode<synchronous>, transform_indices = @transform_6, window_bounds = array<i64: 128, 128>}, {pipeline_mode = #tpu.pipeline_mode<synchronous>, transform_indices = @transform_7, window_bounds = array<i64: 1, 128>}, {pipeline_mode = #tpu.pipeline_mode<synchronous>, transform_indices = @transform_8, window_bounds = array<i64: 1, 128>}, {transform_indices = @transform_9, window_bounds = array<i64: 1, 8, 128>}, {transform_indices = @transform_10, window_bounds = array<i64: 1, 8, 128>}]} {
    %c0 = arith.constant 0 : index
    %c0_0 = arith.constant 0 : index
    %c0_1 = arith.constant 0 : index
    %0 = vector.load %arg2[%c0, %c0_0, %c0_1] : memref<1x8x128xbf16, #tpu.memory_space<vmem>>, vector<1x8x128xbf16>
    %1 = vector.shape_cast %0 : vector<1x8x128xbf16> to vector<8x128xbf16>
    %2 = arith.extf %1 : vector<8x128xbf16> to vector<8x128xf32>
    %c0_2 = arith.constant 0 : index
    %c0_3 = arith.constant 0 : index
    %c0_4 = arith.constant 0 : index
    %3 = vector.load %arg3[%c0_2, %c0_3, %c0_4] : memref<1x8x128xbf16, #tpu.memory_space<vmem>>, vector<1x8x128xbf16>
    %4 = vector.shape_cast %3 : vector<1x8x128xbf16> to vector<8x128xbf16>
    %5 = arith.extf %4 : vector<8x128xbf16> to vector<8x128xf32>
    %c0_5 = arith.constant 0 : index
    %c0_6 = arith.constant 0 : index
    %6 = vector.load %arg6[%c0_5, %c0_6] : memref<128x128xbf16, #tpu.memory_space<vmem>>, vector<128x128xbf16>
    %cst = arith.constant dense<0.000000e+00> : vector<8x128xf32>
    %7 = tpu.matmul %1, %6, %cst {dimension_numbers = #tpu.dot_dimension_numbers<[1], [0], [0], [1], [0, 0, 1, 1], [], []>} : vector<8x128xbf16>, vector<128x128xbf16>, vector<8x128xf32> -> vector<8x128xf32>
    %c0_7 = arith.constant 0 : index
    %c0_8 = arith.constant 0 : index
    %8 = vector.load %arg7[%c0_7, %c0_8] : memref<1x128xf32, #tpu.memory_space<vmem>>, vector<1x128xf32>
    %9 = vector.broadcast %8 : vector<1x128xf32> to vector<8x128xf32>
    %10 = arith.addf %7, %9 : vector<8x128xf32>
    %11 = arith.addf %10, %5 : vector<8x128xf32>
    %cst_9 = arith.constant 0.707106769 : f32
    %12 = vector.broadcast %cst_9 : f32 to vector<8x128xf32>
    %13 = arith.mulf %11, %12 : vector<8x128xf32>
    %14 = arith.truncf %13 : vector<8x128xf32> to vector<8x128xbf16>
    %c0_10 = arith.constant 0 : index
    %c0_11 = arith.constant 0 : index
    %c0_12 = arith.constant 0 : index
    %15 = vector.load %arg4[%c0_10, %c0_11, %c0_12] : memref<1x128x128xbf16, #tpu.memory_space<vmem>>, vector<1x128x128xbf16>
    %16 = vector.shape_cast %15 : vector<1x128x128xbf16> to vector<128x128xbf16>
    %cst_13 = arith.constant dense<0.000000e+00> : vector<8x128xf32>
    %17 = tpu.matmul %14, %16, %cst_13 {dimension_numbers = #tpu.dot_dimension_numbers<[1], [0], [0], [1], [0, 0, 1, 1], [], []>} : vector<8x128xbf16>, vector<128x128xbf16>, vector<8x128xf32> -> vector<8x128xf32>
    %c0_14 = arith.constant 0 : index
    %c0_15 = arith.constant 0 : index
    %18 = vector.load %arg10[%c0_14, %c0_15] : memref<1x128xf32, #tpu.memory_space<vmem>>, vector<1x128xf32>
    %19 = vector.broadcast %18 : vector<1x128xf32> to vector<8x128xf32>
    %20 = arith.addf %17, %19 : vector<8x128xf32>
    %cst_16 = arith.constant dense<0xFF800000> : vector<8xf32>
    %21 = vector.multi_reduction <maximumf>, %20, %cst_16 [1] : vector<8x128xf32> to vector<8xf32>
    %22 = vector.shape_cast %21 : vector<8xf32> to vector<8x1xf32>
    %23 = vector.broadcast %22 : vector<8x1xf32> to vector<8x128xf32>
    %24 = arith.subf %20, %23 : vector<8x128xf32>
    %25 = math.exp %24 : vector<8x128xf32>
    %cst_17 = arith.constant dense<0.000000e+00> : vector<8xf32>
    %26 = vector.multi_reduction <add>, %25, %cst_17 [1] : vector<8x128xf32> to vector<8xf32>
    %27 = vector.shape_cast %26 : vector<8xf32> to vector<8x1xf32>
    %28 = tpu.reciprocal %27 {approx = true} : vector<8x1xf32> -> vector<8x1xf32>
    %29 = vector.broadcast %28 : vector<8x1xf32> to vector<8x128xf32>
    %30 = arith.mulf %25, %29 : vector<8x128xf32>
    %c0_18 = arith.constant 0 : index
    %c0_19 = arith.constant 0 : index
    %c0_20 = arith.constant 0 : index
    %31 = vector.load %arg12[%c0_18, %c0_19, %c0_20] : memref<1x8x128xf32, #tpu.memory_space<vmem>>, vector<1x8x128xf32>
    %32 = vector.shape_cast %31 : vector<1x8x128xf32> to vector<8x128xf32>
    %33 = vector.shape_cast %30 : vector<8x128xf32> to vector<1x8x128xf32>
    tpu.vector_store %arg12[%c0_18, %c0_19, %c0_20], %33 {strides = array<i32>} : memref<1x8x128xf32, #tpu.memory_space<vmem>>, vector<1x8x128xf32>,
    %34 = arith.truncf %30 : vector<8x128xf32> to vector<8x128xbf16>
    %c0_21 = arith.constant 0 : index
    %c0_22 = arith.constant 0 : index
    %c0_23 = arith.constant 0 : index
    %35 = vector.load %arg5[%c0_21, %c0_22, %c0_23] : memref<1x128x128xbf16, #tpu.memory_space<vmem>>, vector<1x128x128xbf16>
    %36 = vector.shape_cast %35 : vector<1x128x128xbf16> to vector<128x128xbf16>
    %cst_24 = arith.constant dense<0.000000e+00> : vector<8x128xf32>
    %37 = tpu.matmul %34, %36, %cst_24 {dimension_numbers = #tpu.dot_dimension_numbers<[1], [0], [0], [1], [0, 0, 1, 1], [], []>} : vector<8x128xbf16>, vector<128x128xbf16>, vector<8x128xf32> -> vector<8x128xf32>
    %38 = arith.truncf %37 : vector<8x128xf32> to vector<8x128xbf16>
    %c0_25 = arith.constant 0 : index
    %c0_26 = arith.constant 0 : index
    %39 = vector.load %arg8[%c0_25, %c0_26] : memref<128x128xbf16, #tpu.memory_space<vmem>>, vector<128x128xbf16>
    %cst_27 = arith.constant dense<0.000000e+00> : vector<8x128xf32>
    %40 = tpu.matmul %38, %39, %cst_27 {dimension_numbers = #tpu.dot_dimension_numbers<[1], [0], [0], [1], [0, 0, 1, 1], [], []>} : vector<8x128xbf16>, vector<128x128xbf16>, vector<8x128xf32> -> vector<8x128xf32>
    %c0_28 = arith.constant 0 : index
    %c0_29 = arith.constant 0 : index
    %41 = vector.load %arg9[%c0_28, %c0_29] : memref<1x128xf32, #tpu.memory_space<vmem>>, vector<1x128xf32>
    %42 = vector.broadcast %41 : vector<1x128xf32> to vector<8x128xf32>
    %43 = arith.addf %40, %42 : vector<8x128xf32>
    %44 = arith.addf %43, %2 : vector<8x128xf32>
    %cst_30 = arith.constant 0.707106769 : f32
    %45 = vector.broadcast %cst_30 : f32 to vector<8x128xf32>
    %46 = arith.mulf %44, %45 : vector<8x128xf32>
    %c0_31 = arith.constant 0 : index
    %c0_32 = arith.constant 0 : index
    %c0_33 = arith.constant 0 : index
    %47 = vector.load %arg11[%c0_31, %c0_32, %c0_33] : memref<1x8x128xf32, #tpu.memory_space<vmem>>, vector<1x8x128xf32>
    %48 = vector.shape_cast %47 : vector<1x8x128xf32> to vector<8x128xf32>
    %49 = vector.shape_cast %46 : vector<8x128xf32> to vector<1x8x128xf32>
    tpu.vector_store %arg11[%c0_31, %c0_32, %c0_33], %49 {strides = array<i32>} : memref<1x8x128xf32, #tpu.memory_space<vmem>>, vector<1x8x128xf32>,
    return
  }
  func.func @transform_0(%arg0: i32, %arg1: i32) -> (i32, i32, i32) {
    %c0_i32 = arith.constant 0 : i32
    %c0_i32_0 = arith.constant 0 : i32
    return %arg0, %arg1, %c0_i32 : i32, i32, i32
  }
  func.func @transform_1(%arg0: i32, %arg1: i32) -> (i32, i32, i32) {
    %c0_i32 = arith.constant 0 : i32
    %c0_i32_0 = arith.constant 0 : i32
    return %arg0, %arg1, %c0_i32 : i32, i32, i32
  }
  func.func @transform_2(%arg0: i32, %arg1: i32) -> (i32, i32, i32) {
    %c0_i32 = arith.constant 0 : i32
    %c0_i32_0 = arith.constant 0 : i32
    %c0_i32_1 = arith.constant 0 : i32
    return %arg0, %c0_i32, %c0_i32_0 : i32, i32, i32
  }
  func.func @transform_3(%arg0: i32, %arg1: i32) -> (i32, i32, i32) {
    %c0_i32 = arith.constant 0 : i32
    %c0_i32_0 = arith.constant 0 : i32
    %c0_i32_1 = arith.constant 0 : i32
    return %arg0, %c0_i32, %c0_i32_0 : i32, i32, i32
  }
  func.func @transform_4(%arg0: i32, %arg1: i32) -> (i32, i32) {
    %c0_i32 = arith.constant 0 : i32
    %c0_i32_0 = arith.constant 0 : i32
    %c0_i32_1 = arith.constant 0 : i32
    return %c0_i32, %c0_i32_0 : i32, i32
  }
  func.func @transform_5(%arg0: i32, %arg1: i32) -> (i32, i32) {
    %c0_i32 = arith.constant 0 : i32
    %c0_i32_0 = arith.constant 0 : i32
    %c0_i32_1 = arith.constant 0 : i32
    return %c0_i32, %c0_i32_0 : i32, i32
  }
  func.func @transform_6(%arg0: i32, %arg1: i32) -> (i32, i32) {
    %c0_i32 = arith.constant 0 : i32
    %c0_i32_0 = arith.constant 0 : i32
    %c0_i32_1 = arith.constant 0 : i32
    return %c0_i32, %c0_i32_0 : i32, i32
  }
  func.func @transform_7(%arg0: i32, %arg1: i32) -> (i32, i32) {
    %c0_i32 = arith.constant 0 : i32
    %c0_i32_0 = arith.constant 0 : i32
    %c0_i32_1 = arith.constant 0 : i32
    return %c0_i32, %c0_i32_0 : i32, i32
  }
  func.func @transform_8(%arg0: i32, %arg1: i32) -> (i32, i32) {
    %c0_i32 = arith.constant 0 : i32
    %c0_i32_0 = arith.constant 0 : i32
    %c0_i32_1 = arith.constant 0 : i32
    return %c0_i32, %c0_i32_0 : i32, i32
  }
  func.func @transform_9(%arg0: i32, %arg1: i32) -> (i32, i32, i32) {
    %c0_i32 = arith.constant 0 : i32
    %c0_i32_0 = arith.constant 0 : i32
    return %arg0, %arg1, %c0_i32 : i32, i32, i32
  }
  func.func @transform_10(%arg0: i32, %arg1: i32) -> (i32, i32, i32) {
    %c0_i32 = arith.constant 0 : i32
    %c0_i32_0 = arith.constant 0 : i32
    return %arg0, %arg1, %c0_i32 : i32, i32, i32
  }
}

</mosaic_0001>

<llo_original>
// kernel: tpu_custom_call.1
$region0: #{tpu_custom_call.1}
  #allocation0 [shape = 'u32[]', space=smem, size = 0x4, offset = 0x4, fixed_abs, tag = 'smem constant byte address 0x4 - core index']
  #allocation1 [shape = 'u32[144,128]{1,0:T(1,128)}', space=vmem, size = 0x12000, scoped, tag = 'internal scratch']
  %s0 = inlined_call_operand.hbm [shape: bf16[2,8,128], index: 0, kind: input, shape index: {}]
  %s1 = inlined_call_operand.hbm [shape: bf16[2,8,128], index: 1, kind: input, shape index: {}]
  %s2 = inlined_call_operand.hbm [shape: bf16[2,128,128], index: 2, kind: input, shape index: {}]
  %s3 = inlined_call_operand.hbm [shape: bf16[2,128,128], index: 3, kind: input, shape index: {}]
  %s4 = inlined_call_operand.hbm [shape: bf16[128,128], index: 4, kind: input, shape index: {}]
  %s5 = inlined_call_operand.vmem [shape: f32[1,128], index: 5, kind: input, shape index: {}]
  %s6 = inlined_call_operand.hbm [shape: bf16[128,128], index: 6, kind: input, shape index: {}]
  %s7 = inlined_call_operand.vmem [shape: f32[1,128], index: 7, kind: input, shape index: {}]
  %s8 = inlined_call_operand.vmem [shape: f32[1,128], index: 8, kind: input, shape index: {}]
  %s9 = inlined_call_operand.hbm [shape: f32[2,8,128], index: 9, kind: output, shape index: {0}]
  %s10 = inlined_call_operand.hbm [shape: f32[2,8,128], index: 10, kind: output, shape index: {1}]
  %11 = xla_tuple %s9, %s10
  %s12 = sld [smem:[#allocation0]]
  $region101: #{tpu_custom_call.1} parent=0
    _
  %s14 = ssub.s32 1, %s12
  %s15 = scalar_select 0, %s14, %s12
  $region1: #{tpu_custom_call.1} parent=0
    #allocation2 [shape = 'u8[4096]{0}', space=vmem, size = 0x1000, scoped, tag = 'input window, operand 0']
    #allocation3 [shape = 's32[2]{0}', space=sflag, size = 0x8, scoped, tag = 'scoped memory for tpu_custom_call.1']
    #allocation4 [shape = 's32[2]{0}', space=sflag, size = 0x8, scoped, tag = 'scoped memory for tpu_custom_call.1']
    #allocation5 [shape = 'u8[4096]{0}', space=vmem, size = 0x1000, scoped, tag = 'input window, operand 1']
    #allocation6 [shape = 's32[2]{0}', space=sflag, size = 0x8, scoped, tag = 'scoped memory for tpu_custom_call.1']
    #allocation7 [shape = 'u8[32768]{0}', space=vmem, size = 0x8000, scoped, tag = 'input window, operand 2, single buffered']
    #allocation8 [shape = 'u8[32768]{0}', space=vmem, size = 0x8000, scoped, tag = 'input window, operand 3, single buffered']
    #allocation9 [shape = 's32[1]{0}', space=sflag, size = 0x4, scoped, tag = 'scoped memory for tpu_custom_call.1']
    #allocation10 [shape = 'u8[32768]{0}', space=vmem, size = 0x8000, scoped, tag = 'input window, operand 4, single buffered']
    #allocation11 [shape = 'u8[32768]{0}', space=vmem, size = 0x8000, scoped, tag = 'input window, operand 6, single buffered']
    #allocation12 [shape = 's32[1]{0}', space=sflag, size = 0x4, scoped, tag = 'scoped memory for tpu_custom_call.1']
    #allocation13 [shape = 'u8[8192]{0}', space=vmem, size = 0x2000, scoped, tag = 'output window, operand 0']
    #allocation14 [shape = 'u8[8192]{0}', space=vmem, size = 0x2000, scoped, tag = 'output window, operand 1']
    #allocation15 [shape = 's32[2]{0}', space=sflag, size = 0x8, scoped, tag = 'scoped memory for tpu_custom_call.1']
    %16 = vsyncpa [#allocation3], 0
    %s17 = scalar_lea.sflag [#allocation3], 1
    %18 = vsyncpa %s17, 0
    %19 = vsyncpa [#allocation6], 0
    %s20 = scalar_lea.sflag [#allocation6], 1
    %21 = vsyncpa %s20, 0
    %22 = vsyncpa [#allocation9], 0
    %23 = vsyncpa [#allocation12], 0
    %24 = vsyncpa [#allocation4], 0
    %s25 = scalar_lea.sflag [#allocation4], 1
    %26 = vsyncpa %s25, 0
    %27 = vsyncpa [#allocation15], 0
    %s28 = scalar_lea.sflag [#allocation15], 1
    %29 = vsyncpa %s28, 0
    loop: start=0, step=1, limit=4
    $region2: #{tpu_custom_call.1} parent=1 // loop_pre_header
      _
    $region3: #{tpu_custom_call.1} parent=1 // loop_header
      %s31 = sphi 0, %s35
      %p32 = scmp.ge.s32.totalorder %s31, 4
      %s38 = sphi 0, %s50
      %s39 = sphi 0, %s46
      %s40 = sphi 0, %s38
      %s41 = sphi 0, %s39
      %s42 = sphi 0, %s40
      %s43 = sphi 0, %s41
      %s55 = sphi 0, %s57
      %s58 = sphi 0, %s55
      %s59 = sphi 0, %s58
      %s75 = sphi 0, %s59
      %s83 = sphi 0, %s85
      %s86 = sphi 0, %s83
      %s87 = sphi 0, %s86
      %s103 = sphi 0, %s87
      %s109 = sphi 0, %s111
      %s112 = sphi 0, %s109
      %s113 = sphi 0, %s112
      %s129 = sphi 0, %s113
      %s135 = sphi 0, %s137
      %s138 = sphi 0, %s135
      %s139 = sphi 0, %s138
      %s155 = sphi 0, %s139
      %s159 = sphi 0, %s159
      %s161 = sphi 0, %s159
      %s162 = sphi 0, %s161
      %s176 = sphi 0, %s162
      %s180 = sphi 0, %s180
      %s182 = sphi 0, %s180
      %s183 = sphi 0, %s182
      %s197 = sphi 0, %s183
      %s201 = sphi 0, %s201
      %s203 = sphi 0, %s201
      %s204 = sphi 0, %s203
      %s218 = sphi 0, %s204
      %s222 = sphi 0, %s222
      %s224 = sphi 0, %s222
      %s225 = sphi 0, %s224
      %s239 = sphi 0, %s225
      %s243 = sphi 0, %s243
      %s245 = sphi 0, %s243
      %s246 = sphi 0, %s245
      %s260 = sphi 0, %s246
      %s268 = sphi 0, %s270
      %s271 = sphi 0, %s268
      %s272 = sphi 0, %s271
      %s288 = sphi 0, %s272
      %s296 = sphi 0, %s298
      %s299 = sphi 0, %s296
      %s300 = sphi 0, %s299
      %s316 = sphi 0, %s300
    $region4: #{tpu_custom_call.1} parent=1 // loop_header_branch
      %34 = sbr.rel (%p32) target = $region8
    $region5: #{tpu_custom_call.1} parent=1 // loop_body
      %s36 = ssub.s32 %s31, 1
      %s37 = ssub.s32 %s31, 2
      %s44 = sadd.s32 1, %s39
      %p45 = scmp.ge.s32.totalorder %s44, 1
      %s46 = scalar_select %p45, 0, %s44
      %s47 = sadd.s32 1, %s38
      %s48 = scalar_select %p45, %s47, %s38
      %p49 = scmp.ge.s32.totalorder %s48, 2
      %s50 = scalar_select %p49, 0, %s48
      %s51 = ssub.s32 %s38, %s50
      %s52 = ssub.s32 %s39, %s46
      %s53 = sor.u32 %s51, %s52
      %p54 = scmp.eq.s32.totalorder %s53, 0
      %s56 = sadd.s32 %s55, 1
      %s57 = scalar_select %p54, %s55, %s56
      %p60 = pneg %p54
      %p61 = scmp.eq.s32.totalorder %s31, 1
      %p62 = por %p60, %p61
      %p63 = scmp.ne.s32.totalorder %s55, %s58
      %p64 = scmp.eq.s32.totalorder %s31, 0
      %p65 = por %p63, %p64
      %p66 = scmp.ne.s32.totalorder %s55, %s58
      %p67 = scmp.eq.s32.totalorder %s36, 1
      %p68 = por %p66, %p67
      %p69 = scmp.ne.s32.totalorder %s58, %s59
      %p70 = scmp.eq.s32.totalorder %s36, 0
      %p71 = por %p69, %p70
      %p72 = scmp.ne.s32.totalorder %s58, %s59
      %p73 = scmp.eq.s32.totalorder %s37, 1
      %p74 = por %p72, %p73
      %p76 = scmp.ne.s32.totalorder %s59, %s75
      %p77 = scmp.eq.s32.totalorder %s37, 0
      %p78 = por %p76, %p77
      %s79 = ssub.s32 %s38, %s50
      %s80 = ssub.s32 %s39, %s46
      %s81 = sor.u32 %s79, %s80
      %p82 = scmp.eq.s32.totalorder %s81, 0
      %s84 = sadd.s32 %s83, 1
      %s85 = scalar_select %p82, %s83, %s84
      %p88 = pneg %p82
      %p89 = scmp.eq.s32.totalorder %s31, 1
      %p90 = por %p88, %p89
      %p91 = scmp.ne.s32.totalorder %s83, %s86
      %p92 = scmp.eq.s32.totalorder %s31, 0
      %p93 = por %p91, %p92
      %p94 = scmp.ne.s32.totalorder %s83, %s86
      %p95 = scmp.eq.s32.totalorder %s36, 1
      %p96 = por %p94, %p95
      %p97 = scmp.ne.s32.totalorder %s86, %s87
      %p98 = scmp.eq.s32.totalorder %s36, 0
      %p99 = por %p97, %p98
      %p100 = scmp.ne.s32.totalorder %s86, %s87
      %p101 = scmp.eq.s32.totalorder %s37, 1
      %p102 = por %p100, %p101
      %p104 = scmp.ne.s32.totalorder %s87, %s103
      %p105 = scmp.eq.s32.totalorder %s37, 0
      %p106 = por %p104, %p105
      %s107 = ssub.s32 %s38, %s50
      %p108 = scmp.eq.s32.totalorder %s107, 0
      %s110 = sadd.s32 %s109, 1
      %s111 = scalar_select %p108, %s109, %s110
      %p114 = pneg %p108
      %p115 = scmp.eq.s32.totalorder %s31, 1
      %p116 = por %p114, %p115
      %p117 = scmp.ne.s32.totalorder %s109, %s112
      %p118 = scmp.eq.s32.totalorder %s31, 0
      %p119 = por %p117, %p118
      %p120 = scmp.ne.s32.totalorder %s109, %s112
      %p121 = scmp.eq.s32.totalorder %s36, 1
      %p122 = por %p120, %p121
      %p123 = scmp.ne.s32.totalorder %s112, %s113
      %p124 = scmp.eq.s32.totalorder %s36, 0
      %p125 = por %p123, %p124
      %p126 = scmp.ne.s32.totalorder %s112, %s113
      %p127 = scmp.eq.s32.totalorder %s37, 1
      %p128 = por %p126, %p127
      %p130 = scmp.ne.s32.totalorder %s113, %s129
      %p131 = scmp.eq.s32.totalorder %s37, 0
      %p132 = por %p130, %p131
      %s133 = ssub.s32 %s38, %s50
      %p134 = scmp.eq.s32.totalorder %s133, 0
      %s136 = sadd.s32 %s135, 1
      %s137 = scalar_select %p134, %s135, %s136
      %p140 = pneg %p134
      %p141 = scmp.eq.s32.totalorder %s31, 1
      %p142 = por %p140, %p141
      %p143 = scmp.ne.s32.totalorder %s135, %s138
      %p144 = scmp.eq.s32.totalorder %s31, 0
      %p145 = por %p143, %p144
      %p146 = scmp.ne.s32.totalorder %s135, %s138
      %p147 = scmp.eq.s32.totalorder %s36, 1
      %p148 = por %p146, %p147
      %p149 = scmp.ne.s32.totalorder %s138, %s139
      %p150 = scmp.eq.s32.totalorder %s36, 0
      %p151 = por %p149, %p150
      %p152 = scmp.ne.s32.totalorder %s138, %s139
      %p153 = scmp.eq.s32.totalorder %s37, 1
      %p154 = por %p152, %p153
      %p156 = scmp.ne.s32.totalorder %s139, %s155
      %p157 = scmp.eq.s32.totalorder %s37, 0
      %p158 = por %p156, %p157
      %s160 = sadd.s32 %s159, 1
      %p163 = scmp.eq.s32.totalorder %s31, 1
      %p164 = scmp.ne.s32.totalorder %s159, %s161
      %p165 = scmp.eq.s32.totalorder %s31, 0
      %p166 = por %p164, %p165
      %p167 = scmp.ne.s32.totalorder %s159, %s161
      %p168 = scmp.eq.s32.totalorder %s36, 1
      %p169 = por %p167, %p168
      %p170 = scmp.ne.s32.totalorder %s161, %s162
      %p171 = scmp.eq.s32.totalorder %s36, 0
      %p172 = por %p170, %p171
      %p173 = scmp.ne.s32.totalorder %s161, %s162
      %p174 = scmp.eq.s32.totalorder %s37, 1
      %p175 = por %p173, %p174
      %p177 = scmp.ne.s32.totalorder %s162, %s176
      %p178 = scmp.eq.s32.totalorder %s37, 0
      %p179 = por %p177, %p178
      %s181 = sadd.s32 %s180, 1
      %p184 = scmp.eq.s32.totalorder %s31, 1
      %p185 = scmp.ne.s32.totalorder %s180, %s182
      %p186 = scmp.eq.s32.totalorder %s31, 0
      %p187 = por %p185, %p186
      %p188 = scmp.ne.s32.totalorder %s180, %s182
      %p189 = scmp.eq.s32.totalorder %s36, 1
      %p190 = por %p188, %p189
      %p191 = scmp.ne.s32.totalorder %s182, %s183
      %p192 = scmp.eq.s32.totalorder %s36, 0
      %p193 = por %p191, %p192
      %p194 = scmp.ne.s32.totalorder %s182, %s183
      %p195 = scmp.eq.s32.totalorder %s37, 1
      %p196 = por %p194, %p195
      %p198 = scmp.ne.s32.totalorder %s183, %s197
      %p199 = scmp.eq.s32.totalorder %s37, 0
      %p200 = por %p198, %p199
      %s202 = sadd.s32 %s201, 1
      %p205 = scmp.eq.s32.totalorder %s31, 1
      %p206 = scmp.ne.s32.totalorder %s201, %s203
      %p207 = scmp.eq.s32.totalorder %s31, 0
      %p208 = por %p206, %p207
      %p209 = scmp.ne.s32.totalorder %s201, %s203
      %p210 = scmp.eq.s32.totalorder %s36, 1
      %p211 = por %p209, %p210
      %p212 = scmp.ne.s32.totalorder %s203, %s204
      %p213 = scmp.eq.s32.totalorder %s36, 0
      %p214 = por %p212, %p213
      %p215 = scmp.ne.s32.totalorder %s203, %s204
      %p216 = scmp.eq.s32.totalorder %s37, 1
      %p217 = por %p215, %p216
      %p219 = scmp.ne.s32.totalorder %s204, %s218
      %p220 = scmp.eq.s32.totalorder %s37, 0
      %p221 = por %p219, %p220
      %s223 = sadd.s32 %s222, 1
      %p226 = scmp.eq.s32.totalorder %s31, 1
      %p227 = scmp.ne.s32.totalorder %s222, %s224
      %p228 = scmp.eq.s32.totalorder %s31, 0
      %p229 = por %p227, %p228
      %p230 = scmp.ne.s32.totalorder %s222, %s224
      %p231 = scmp.eq.s32.totalorder %s36, 1
      %p232 = por %p230, %p231
      %p233 = scmp.ne.s32.totalorder %s224, %s225
      %p234 = scmp.eq.s32.totalorder %s36, 0
      %p235 = por %p233, %p234
      %p236 = scmp.ne.s32.totalorder %s224, %s225
      %p237 = scmp.eq.s32.totalorder %s37, 1
      %p238 = por %p236, %p237
      %p240 = scmp.ne.s32.totalorder %s225, %s239
      %p241 = scmp.eq.s32.totalorder %s37, 0
      %p242 = por %p240, %p241
      %s244 = sadd.s32 %s243, 1
      %p247 = scmp.eq.s32.totalorder %s31, 1
      %p248 = scmp.ne.s32.totalorder %s243, %s245
      %p249 = scmp.eq.s32.totalorder %s31, 0
      %p250 = por %p248, %p249
      %p251 = scmp.ne.s32.totalorder %s243, %s245
      %p252 = scmp.eq.s32.totalorder %s36, 1
      %p253 = por %p251, %p252
      %p254 = scmp.ne.s32.totalorder %s245, %s246
      %p255 = scmp.eq.s32.totalorder %s36, 0
      %p256 = por %p254, %p255
      %p257 = scmp.ne.s32.totalorder %s245, %s246
      %p258 = scmp.eq.s32.totalorder %s37, 1
      %p259 = por %p257, %p258
      %p261 = scmp.ne.s32.totalorder %s246, %s260
      %p262 = scmp.eq.s32.totalorder %s37, 0
      %p263 = por %p261, %p262
      %s264 = ssub.s32 %s38, %s50
      %s265 = ssub.s32 %s39, %s46
      %s266 = sor.u32 %s264, %s265
      %p267 = scmp.eq.s32.totalorder %s266, 0
      %s269 = sadd.s32 %s268, 1
      %s270 = scalar_select %p267, %s268, %s269
      %p273 = pneg %p267
      %p274 = scmp.eq.s32.totalorder %s31, 1
      %p275 = por %p273, %p274
      %p276 = scmp.ne.s32.totalorder %s268, %s271
      %p277 = scmp.eq.s32.totalorder %s31, 0
      %p278 = por %p276, %p277
      %p279 = scmp.ne.s32.totalorder %s268, %s271
      %p280 = scmp.eq.s32.totalorder %s36, 1
      %p281 = por %p279, %p280
      %p282 = scmp.ne.s32.totalorder %s271, %s272
      %p283 = scmp.eq.s32.totalorder %s36, 0
      %p284 = por %p282, %p283
      %p285 = scmp.ne.s32.totalorder %s271, %s272
      %p286 = scmp.eq.s32.totalorder %s37, 1
      %p287 = por %p285, %p286
      %p289 = scmp.ne.s32.totalorder %s272, %s288
      %p290 = scmp.eq.s32.totalorder %s37, 0
      %p291 = por %p289, %p290
      %s292 = ssub.s32 %s38, %s50
      %s293 = ssub.s32 %s39, %s46
      %s294 = sor.u32 %s292, %s293
      %p295 = scmp.eq.s32.totalorder %s294, 0
      %s297 = sadd.s32 %s296, 1
      %s298 = scalar_select %p295, %s296, %s297
      %p301 = pneg %p295
      %p302 = scmp.eq.s32.totalorder %s31, 1
      %p303 = por %p301, %p302
      %p304 = scmp.ne.s32.totalorder %s296, %s299
      %p305 = scmp.eq.s32.totalorder %s31, 0
      %p306 = por %p304, %p305
      %p307 = scmp.ne.s32.totalorder %s296, %s299
      %p308 = scmp.eq.s32.totalorder %s36, 1
      %p309 = por %p307, %p308
      %p310 = scmp.ne.s32.totalorder %s299, %s300
      %p311 = scmp.eq.s32.totalorder %s36, 0
      %p312 = por %p310, %p311
      %p313 = scmp.ne.s32.totalorder %s299, %s300
      %p314 = scmp.eq.s32.totalorder %s37, 1
      %p315 = por %p313, %p314
      %p317 = scmp.ne.s32.totalorder %s300, %s316
      %p318 = scmp.eq.s32.totalorder %s37, 0
      %p319 = por %p317, %p318
      %p320 = scmp.le.s32.totalorder 1, %s31
      %p321 = scmp.lt.s32.totalorder %s31, 3
      %p322 = pnand %p320, %p321
      %p323 = pneg %p322
      // Predicated region
      $region9: #{tpu_custom_call.1} parent=5 // pred_check
        _
      $region10: #{tpu_custom_call.1} parent=5 // pred_check_branch
        %325 = sbr.rel (%p322) target = $region12
      $region11: #{tpu_custom_call.1} parent=5 // pred_region
        %s326 = ssub.s32 %s31, 1
        // Predicated region
        $region13: #{tpu_custom_call.1} parent=11 // pred_check
          %p327 = pneg %p125
        $region14: #{tpu_custom_call.1} parent=11 // pred_check_branch
          %329 = sbr.rel (%p327) target = $region16
        $region15: #{tpu_custom_call.1} parent=11 // pred_region
          %s331 = ssub.s32 1024, 1024
          %332 = vsyncadd [#allocation6], %s331
          %s333 = smul.addr %s40, 16
          %s334 = smul.addr %s333, 64
          %s335 = scalar_lea.hbm %s2, %s334
          %s336 = sshll.u32 [#allocation7], 4
          %s337 = int_to_ptr.vmem [resolvable:$true] %s336
          %342 = dma.hbm_to_vmem [thread:$0]  %s335, 1024, %s337, [#allocation6], 64, 64, 4
        $region16: #{tpu_custom_call.1} parent=11 // pred_fallthru
          _
        // Predicated region
        $region17: #{tpu_custom_call.1} parent=11 // pred_check
          %p343 = pneg %p151
        $region18: #{tpu_custom_call.1} parent=11 // pred_check_branch
          %345 = sbr.rel (%p343) target = $region20
        $region19: #{tpu_custom_call.1} parent=11 // pred_region
          %s347 = ssub.s32 1024, 1024
          %348 = vsyncadd [#allocation9], %s347
          %s349 = smul.addr %s40, 16
          %s350 = smul.addr %s349, 64
          %s351 = scalar_lea.hbm %s3, %s350
          %s352 = sshll.u32 [#allocation8], 4
          %s353 = int_to_ptr.vmem [resolvable:$true] %s352
          %358 = dma.hbm_to_vmem [thread:$0]  %s351, 1024, %s353, [#allocation9], 64, 64, 4
        $region20: #{tpu_custom_call.1} parent=11 // pred_fallthru
          _
        // Predicated region
        $region21: #{tpu_custom_call.1} parent=11 // pred_check
          %p359 = pneg %p172
        $region22: #{tpu_custom_call.1} parent=11 // pred_check_branch
          %361 = sbr.rel (%p359) target = $region24
        $region23: #{tpu_custom_call.1} parent=11 // pred_region
          %s363 = ssub.s32 1024, 1024
          %364 = vsyncadd [#allocation9], %s363
          %s365 = sshll.u32 [#allocation10], 4
          %s366 = int_to_ptr.vmem [resolvable:$true] %s365
          %371 = dma.hbm_to_vmem [thread:$0]  %s4, 1024, %s366, [#allocation9], 64, 64, 4
        $region24: #{tpu_custom_call.1} parent=11 // pred_fallthru
          _
        // Predicated region
        $region25: #{tpu_custom_call.1} parent=11 // pred_check
          %p372 = pneg %p193
        $region26: #{tpu_custom_call.1} parent=11 // pred_check_branch
          %374 = sbr.rel (%p372) target = $region28
        $region27: #{tpu_custom_call.1} parent=11 // pred_region
          _
        $region28: #{tpu_custom_call.1} parent=11 // pred_fallthru
          _
        // Predicated region
        $region29: #{tpu_custom_call.1} parent=11 // pred_check
          %p375 = pneg %p214
        $region30: #{tpu_custom_call.1} parent=11 // pred_check_branch
          %377 = sbr.rel (%p375) target = $region32
        $region31: #{tpu_custom_call.1} parent=11 // pred_region
          %s379 = ssub.s32 1024, 1024
          %380 = vsyncadd [#allocation12], %s379
          %s381 = sshll.u32 [#allocation11], 4
          %s382 = int_to_ptr.vmem [resolvable:$true] %s381
          %387 = dma.hbm_to_vmem [thread:$0]  %s6, 1024, %s382, [#allocation12], 64, 64, 4
        $region32: #{tpu_custom_call.1} parent=11 // pred_fallthru
          _
        // Predicated region
        $region33: #{tpu_custom_call.1} parent=11 // pred_check
          %p388 = pneg %p235
        $region34: #{tpu_custom_call.1} parent=11 // pred_check_branch
          %390 = sbr.rel (%p388) target = $region36
        $region35: #{tpu_custom_call.1} parent=11 // pred_region
          _
        $region36: #{tpu_custom_call.1} parent=11 // pred_fallthru
          _
        // Predicated region
        $region37: #{tpu_custom_call.1} parent=11 // pred_check
          %p391 = pneg %p256
        $region38: #{tpu_custom_call.1} parent=11 // pred_check_branch
          %393 = sbr.rel (%p391) target = $region40
        $region39: #{tpu_custom_call.1} parent=11 // pred_region
          _
        $region40: #{tpu_custom_call.1} parent=11 // pred_fallthru
          _
      $region12: #{tpu_custom_call.1} parent=5 // pred_fallthru
        _
      %p394 = scmp.lt.s32.totalorder %s31, 2
      // Predicated region
      $region41: #{tpu_custom_call.1} parent=5 // pred_check
        %p395 = pneg %p394
      $region42: #{tpu_custom_call.1} parent=5 // pred_check_branch
        %397 = sbr.rel (%p395) target = $region44
      $region43: #{tpu_custom_call.1} parent=5 // pred_region
        // Predicated region
        $region45: #{tpu_custom_call.1} parent=43 // pred_check
          %p398 = pneg %p65
        $region46: #{tpu_custom_call.1} parent=43 // pred_check_branch
          %400 = sbr.rel (%p398) target = $region48
        $region47: #{tpu_custom_call.1} parent=43 // pred_region
          %s401 = sand.u32 %s55, 1
          %s402 = scalar_lea.sflag [#allocation3], %s401
          %s403 = sand.u32 %s55, 1
          %s404 = smul.addr %s403, 4
          %s405 = scalar_lea.vmem [#allocation2], %s404
          %s407 = ssub.s32 64, 64
          %408 = vsyncadd %s402, %s407
          %s409 = sadd.s32 %s39, %s38
          %s410 = smul.addr %s409, 64
          %s411 = scalar_lea.hbm %s0, %s410
          %s413 = sshll.u32 %s405, 4
          %s414 = int_to_ptr.vmem [resolvable:$true] %s413
          %416 = dma.hbm_to_vmem [thread:$0]  %s411, 64, %s414, %s402
        $region48: #{tpu_custom_call.1} parent=43 // pred_fallthru
          _
        // Predicated region
        $region49: #{tpu_custom_call.1} parent=43 // pred_check
          %p417 = pneg %p93
        $region50: #{tpu_custom_call.1} parent=43 // pred_check_branch
          %419 = sbr.rel (%p417) target = $region52
        $region51: #{tpu_custom_call.1} parent=43 // pred_region
          %s420 = sand.u32 %s31, 1
          %s421 = scalar_lea.sflag [#allocation6], %s420
          %s422 = sand.u32 %s83, 1
          %s423 = smul.addr %s422, 4
          %s424 = scalar_lea.vmem [#allocation5], %s423
          %s426 = ssub.s32 64, 64
          %427 = vsyncadd %s421, %s426
          %s428 = sadd.s32 %s39, %s38
          %s429 = smul.addr %s428, 64
          %s430 = scalar_lea.hbm %s1, %s429
          %s432 = sshll.u32 %s424, 4
          %s433 = int_to_ptr.vmem [resolvable:$true] %s432
          %435 = dma.hbm_to_vmem [thread:$0]  %s430, 64, %s433, %s421
        $region52: #{tpu_custom_call.1} parent=43 // pred_fallthru
          _
      $region44: #{tpu_custom_call.1} parent=5 // pred_fallthru
        _
      %p436 = scmp.le.s32.totalorder 1, %s31
      %p437 = scmp.lt.s32.totalorder %s31, 3
      %p438 = pnand %p436, %p437
      %p439 = pneg %p438
      // Predicated region
      $region53: #{tpu_custom_call.1} parent=5 // pred_check
        _
      $region54: #{tpu_custom_call.1} parent=5 // pred_check_branch
        %441 = sbr.rel (%p438) target = $region56
      $region55: #{tpu_custom_call.1} parent=5 // pred_region
        %s442 = ssub.s32 %s31, 1
        %s443 = sand.u32 %s58, 1
        %s444 = scalar_lea.sflag [#allocation3], %s443
        %s445 = sand.u32 %s58, 1
        %s446 = smul.addr %s445, 4
        %s447 = scalar_lea.vmem [#allocation2], %s446
        // Predicated region
        $region57: #{tpu_custom_call.1} parent=55 // pred_check
          %p448 = pneg %p71
        $region58: #{tpu_custom_call.1} parent=55 // pred_check_branch
          %450 = sbr.rel (%p448) target = $region60
        $region59: #{tpu_custom_call.1} parent=55 // pred_region
          %451 = dma.done %s444, 64
        $region60: #{tpu_custom_call.1} parent=55 // pred_fallthru
          _
        %s452 = sand.u32 %s36, 1
        %s453 = scalar_lea.sflag [#allocation6], %s452
        %s454 = sand.u32 %s86, 1
        %s455 = smul.addr %s454, 4
        %s456 = scalar_lea.vmem [#allocation5], %s455
        // Predicated region
        $region61: #{tpu_custom_call.1} parent=55 // pred_check
          %p457 = pneg %p99
        $region62: #{tpu_custom_call.1} parent=55 // pred_check_branch
          %459 = sbr.rel (%p457) target = $region64
        $region63: #{tpu_custom_call.1} parent=55 // pred_region
          %460 = dma.done %s453, 64
        $region64: #{tpu_custom_call.1} parent=55 // pred_fallthru
          _
        // Predicated region
        $region65: #{tpu_custom_call.1} parent=55 // pred_check
          %p461 = pneg %p125
        $region66: #{tpu_custom_call.1} parent=55 // pred_check_branch
          %463 = sbr.rel (%p461) target = $region68
        $region67: #{tpu_custom_call.1} parent=55 // pred_region
          %464 = dma.done [#allocation6], 1024
        $region68: #{tpu_custom_call.1} parent=55 // pred_fallthru
          _
        // Predicated region
        $region69: #{tpu_custom_call.1} parent=55 // pred_check
          %p465 = pneg %p151
        $region70: #{tpu_custom_call.1} parent=55 // pred_check_branch
          %467 = sbr.rel (%p465) target = $region72
        $region71: #{tpu_custom_call.1} parent=55 // pred_region
          %468 = dma.done [#allocation9], 1024
        $region72: #{tpu_custom_call.1} parent=55 // pred_fallthru
          _
        // Predicated region
        $region73: #{tpu_custom_call.1} parent=55 // pred_check
          %p469 = pneg %p172
        $region74: #{tpu_custom_call.1} parent=55 // pred_check_branch
          %471 = sbr.rel (%p469) target = $region76
        $region75: #{tpu_custom_call.1} parent=55 // pred_region
          %472 = dma.done [#allocation9], 1024
        $region76: #{tpu_custom_call.1} parent=55 // pred_fallthru
          _
        // Predicated region
        $region77: #{tpu_custom_call.1} parent=55 // pred_check
          %p473 = pneg %p214
        $region78: #{tpu_custom_call.1} parent=55 // pred_check_branch
          %475 = sbr.rel (%p473) target = $region80
        $region79: #{tpu_custom_call.1} parent=55 // pred_region
          %476 = dma.done [#allocation12], 1024
        $region80: #{tpu_custom_call.1} parent=55 // pred_fallthru
          _
        %s477 = sand.u32 %s58, 1
        %s478 = scalar_lea.sflag [#allocation3], %s477
        %s479 = sand.u32 %s58, 1
        %s480 = smul.addr %s479, 4
        %s481 = scalar_lea.vmem [#allocation2], %s480
        %p482 = pneg %p71
        %p483 = pneg %p68
        %s484 = sand.u32 %s36, 1
        %s485 = scalar_lea.sflag [#allocation6], %s484
        %s486 = sand.u32 %s86, 1
        %s487 = smul.addr %s486, 4
        %s488 = scalar_lea.vmem [#allocation5], %s487
        %p489 = pneg %p99
        %p490 = pneg %p96
        %p491 = pneg %p125
        %p492 = pneg %p122
        %p493 = pneg %p151
        %p494 = pneg %p148
        %p495 = pneg %p172
        %p496 = pneg %p169
        %p497 = pneg %p193
        %p498 = pneg %p190
        %p499 = pneg %p214
        %p500 = pneg %p211
        %p501 = pneg %p235
        %p502 = pneg %p232
        %p503 = pneg %p256
        %p504 = pneg %p253
        %p505 = pneg %p284
        %p506 = pneg %p281
        %s507 = sand.u32 %s271, 1
        %s508 = scalar_lea.sflag [#allocation4], %s507
        %s509 = sand.u32 %s271, 1
        %s510 = smul.addr %s509, 8
        %s511 = scalar_lea.vmem [#allocation13], %s510
        %p512 = pneg %p312
        %p513 = pneg %p309
        %s514 = sand.u32 %s299, 1
        %s515 = scalar_lea.sflag [#allocation15], %s514
        %s516 = sand.u32 %s299, 1
        %s517 = smul.addr %s516, 8
        %s518 = scalar_lea.vmem [#allocation14], %s517
        %v520 = vld [vmem:[%s447] sm:$0xf]
        %v521 = vunpack.c.l.bf16 %v520
        %v522 = vld [vmem:[%s456] sm:$0xf]
        %v523 = vunpack.c.l.bf16 %v522
        %v524 = vld [vmem:[#allocation10] sm:$0xf]
        %v525 = vld [vmem:[#allocation10 + $0x4] sm:$0xf]
        %v526 = vld [vmem:[#allocation10 + $0x8] sm:$0xf]
        %v527 = vld [vmem:[#allocation10 + $0xc] sm:$0xf]
        %v528 = vld [vmem:[#allocation10 + $0x10] sm:$0xf]
        %v529 = vld [vmem:[#allocation10 + $0x14] sm:$0xf]
        %v530 = vld [vmem:[#allocation10 + $0x18] sm:$0xf]
        %v531 = vld [vmem:[#allocation10 + $0x1c] sm:$0xf]
        %v532 = vld [vmem:[#allocation10 + $0x20] sm:$0xf]
        %v533 = vld [vmem:[#allocation10 + $0x24] sm:$0xf]
        %v534 = vld [vmem:[#allocation10 + $0x28] sm:$0xf]
        %v535 = vld [vmem:[#allocation10 + $0x2c] sm:$0xf]
        %v536 = vld [vmem:[#allocation10 + $0x30] sm:$0xf]
        %v537 = vld [vmem:[#allocation10 + $0x34] sm:$0xf]
        %v538 = vld [vmem:[#allocation10 + $0x38] sm:$0xf]
        %v539 = vld [vmem:[#allocation10 + $0x3c] sm:$0xf]
        %v540 = vld [vmem:[%s5] sm:$0x1]
        %v542 = vlaneseq
        %v543 = vshrl.u32 %v542, 7
        %v544 = vsub.s32 0, %v543
        %v545 = vrot.slane %v540, %v544
        %v563 = vunpack.c.l.b16 %v524
        %v564 = vunpack.c.l.b16 %v525
        %v565 = vunpack.c.l.b16 %v526
        %v566 = vunpack.c.l.b16 %v527
        %v567 = vunpack.c.l.b16 %v528
        %v568 = vunpack.c.l.b16 %v529
        %v569 = vunpack.c.l.b16 %v530
        %v570 = vunpack.c.l.b16 %v531
        %v571 = vunpack.c.l.b16 %v532
        %v572 = vunpack.c.l.b16 %v533
        %v573 = vunpack.c.l.b16 %v534
        %v574 = vunpack.c.l.b16 %v535
        %v575 = vunpack.c.l.b16 %v536
        %v576 = vunpack.c.l.b16 %v537
        %v577 = vunpack.c.l.b16 %v538
        %v578 = vunpack.c.l.b16 %v539
        %v579 = vpack.c.b16 %v564, %v563
        %v580 = vpack.c.b16 %v566, %v565
        %v581 = vpack.c.b16 %v568, %v567
        %v582 = vpack.c.b16 %v570, %v569
        %v583 = vpack.c.b16 %v572, %v571
        %v584 = vpack.c.b16 %v574, %v573
        %v585 = vpack.c.b16 %v576, %v575
        %v586 = vpack.c.b16 %v578, %v577
        %595 = vmatprep.subr.bf16.mxu0 0
        %596 = vmatpush1.bf16.msra.mxu0 %v579
        %597 = vmatprep.subr.bf16.mxu0 0
        %598 = vmatpush1.bf16.msra.mxu0 %v580
        %599 = vmatprep.subr.bf16.mxu0 0
        %600 = vmatpush1.bf16.msra.mxu0 %v581
        %601 = vmatprep.subr.bf16.mxu0 0
        %602 = vmatpush1.bf16.msra.mxu0 %v582
        %603 = vmatprep.subr.bf16.mxu0 0
        %604 = vmatpush1.bf16.msra.mxu0 %v583
        %605 = vmatprep.subr.bf16.mxu0 0
        %606 = vmatpush1.bf16.msra.mxu0 %v584
        %607 = vmatprep.subr.bf16.mxu0 0
        %608 = vmatpush1.bf16.msra.mxu0 %v585
        %609 = vmatprep.subr.bf16.mxu0 0
        %610 = vmatpush1.bf16.msra.mxu0 %v586
        %611 = vmatprep.subr.bf16.mxu0 0
        %612 = vmatpush1.bf16.msra.mxu0 0
        %613 = vmatprep.subr.bf16.mxu0 0
        %614 = vmatpush1.bf16.msra.mxu0 0
        %615 = vmatprep.subr.bf16.mxu0 0
        %616 = vmatpush1.bf16.msra.mxu0 0
        %617 = vmatprep.subr.bf16.mxu0 0
        %618 = vmatpush1.bf16.msra.mxu0 0
        %619 = vmatprep.subr.bf16.mxu0 0
        %620 = vmatpush1.bf16.msra.mxu0 0
        %621 = vmatprep.subr.bf16.mxu0 0
        %622 = vmatpush1.bf16.msra.mxu0 0
        %623 = vmatprep.subr.bf16.mxu0 0
        %624 = vmatpush1.bf16.msra.mxu0 0
        %625 = vmatprep.subr.bf16.mxu0 0
        %626 = vmatpush1.bf16.msra.mxu0 0
        %627 = vmatprep.mubr.bf16.mxu0 0
        %628 = vmatmul.mubr.bf16.gmra.mrb[0].mxu0 %v520
        %v629 = vpop.f32.mrb[0].mxu0
        %v630 = vadd.f32 %v545, %v629
        %v631 = vpop.f32.mrb[0].mxu0
        %v632 = vpop.f32.mrb[0].mxu0
        %v633 = vpop.f32.mrb[0].mxu0
        %634 = vdwg.mxu0
        %v635 = vadd.f32 %v630, %v523
        %v636 = vmul.f32 %v635, 0.70710677
        %v637 = vpack.c.bf16 %v636, %v636
        %v638 = vld [vmem:[#allocation7] sm:$0xf]
        %v639 = vld [vmem:[#allocation7 + $0x4] sm:$0xf]
        %v640 = vld [vmem:[#allocation7 + $0x8] sm:$0xf]
        %v641 = vld [vmem:[#allocation7 + $0xc] sm:$0xf]
        %v642 = vld [vmem:[#allocation7 + $0x10] sm:$0xf]
        %v643 = vld [vmem:[#allocation7 + $0x14] sm:$0xf]
        %v644 = vld [vmem:[#allocation7 + $0x18] sm:$0xf]
        %v645 = vld [vmem:[#allocation7 + $0x1c] sm:$0xf]
        %v646 = vld [vmem:[#allocation7 + $0x20] sm:$0xf]
        %v647 = vld [vmem:[#allocation7 + $0x24] sm:$0xf]
        %v648 = vld [vmem:[#allocation7 + $0x28] sm:$0xf]
        %v649 = vld [vmem:[#allocation7 + $0x2c] sm:$0xf]
        %v650 = vld [vmem:[#allocation7 + $0x30] sm:$0xf]
        %v651 = vld [vmem:[#allocation7 + $0x34] sm:$0xf]
        %v652 = vld [vmem:[#allocation7 + $0x38] sm:$0xf]
        %v653 = vld [vmem:[#allocation7 + $0x3c] sm:$0xf]
        %v654 = vld [vmem:[%s8] sm:$0x1]
        %v656 = vlaneseq
        %v657 = vshrl.u32 %v656, 7
        %v658 = vsub.s32 0, %v657
        %v659 = vrot.slane %v654, %v658
        %v677 = vunpack.c.l.b16 %v638
        %v678 = vunpack.c.l.b16 %v639
        %v679 = vunpack.c.l.b16 %v640
        %v680 = vunpack.c.l.b16 %v641
        %v681 = vunpack.c.l.b16 %v642
        %v682 = vunpack.c.l.b16 %v643
        %v683 = vunpack.c.l.b16 %v644
        %v684 = vunpack.c.l.b16 %v645
        %v685 = vunpack.c.l.b16 %v646
        %v686 = vunpack.c.l.b16 %v647
        %v687 = vunpack.c.l.b16 %v648
        %v688 = vunpack.c.l.b16 %v649
        %v689 = vunpack.c.l.b16 %v650
        %v690 = vunpack.c.l.b16 %v651
        %v691 = vunpack.c.l.b16 %v652
        %v692 = vunpack.c.l.b16 %v653
        %v693 = vpack.c.b16 %v678, %v677
        %v694 = vpack.c.b16 %v680, %v679
        %v695 = vpack.c.b16 %v682, %v681
        %v696 = vpack.c.b16 %v684, %v683
        %v697 = vpack.c.b16 %v686, %v685
        %v698 = vpack.c.b16 %v688, %v687
        %v699 = vpack.c.b16 %v690, %v689
        %v700 = vpack.c.b16 %v692, %v691
        %709 = vmatprep.subr.bf16.mxu0 0
        %710 = vmatpush1.bf16.msra.mxu0 %v693
        %711 = vmatprep.subr.bf16.mxu0 0
        %712 = vmatpush1.bf16.msra.mxu0 %v694
        %713 = vmatprep.subr.bf16.mxu0 0
        %714 = vmatpush1.bf16.msra.mxu0 %v695
        %715 = vmatprep.subr.bf16.mxu0 0
        %716 = vmatpush1.bf16.msra.mxu0 %v696
        %717 = vmatprep.subr.bf16.mxu0 0
        %718 = vmatpush1.bf16.msra.mxu0 %v697
        %719 = vmatprep.subr.bf16.mxu0 0
        %720 = vmatpush1.bf16.msra.mxu0 %v698
        %721 = vmatprep.subr.bf16.mxu0 0
        %722 = vmatpush1.bf16.msra.mxu0 %v699
        %723 = vmatprep.subr.bf16.mxu0 0
        %724 = vmatpush1.bf16.msra.mxu0 %v700
        %725 = vmatprep.subr.bf16.mxu0 0
        %726 = vmatpush1.bf16.msra.mxu0 0
        %727 = vmatprep.subr.bf16.mxu0 0
        %728 = vmatpush1.bf16.msra.mxu0 0
        %729 = vmatprep.subr.bf16.mxu0 0
        %730 = vmatpush1.bf16.msra.mxu0 0
        %731 = vmatprep.subr.bf16.mxu0 0
        %732 = vmatpush1.bf16.msra.mxu0 0
        %733 = vmatprep.subr.bf16.mxu0 0
        %734 = vmatpush1.bf16.msra.mxu0 0
        %735 = vmatprep.subr.bf16.mxu0 0
        %736 = vmatpush1.bf16.msra.mxu0 0
        %737 = vmatprep.subr.bf16.mxu0 0
        %738 = vmatpush1.bf16.msra.mxu0 0
        %739 = vmatprep.subr.bf16.mxu0 0
        %740 = vmatpush1.bf16.msra.mxu0 0
        %741 = vmatprep.mubr.bf16.mxu0 0
        %742 = vmatmul.mubr.bf16.gmra.mrb[0].mxu0 %v637
        %v743 = vpop.f32.mrb[0].mxu0
        %v744 = vadd.f32 %v659, %v743
        %v745 = vpop.f32.mrb[0].mxu0
        %v746 = vpop.f32.mrb[0].mxu0
        %v747 = vpop.f32.mrb[0].mxu0
        %748 = vdwg.mxu0
        %749 = vmax.xlane.f32.xlu0 %v744
        %v750 = vpop.xlane.xlu0 %749
        %v751 = vsub.f32 %v744, %v750
        %v752 = vmul.f32 %v751, 1.442695
        %v753 = vpow.pop %v752
        %754 = vadd.xlane.f32.xlu0 %v753
        %v755 = vpop.xlane.xlu0 %754
        %v756 = vrcp.pop %v755
        %v757 = vmul.f32 %v753, %v756
        %758 = vst [vmem:[%s518] sm:$0xff] %v757
        %v759 = vpack.c.bf16 %v757, %v757
        %v760 = vld [vmem:[#allocation8] sm:$0xf]
        %v761 = vld [vmem:[#allocation8 + $0x4] sm:$0xf]
        %v762 = vld [vmem:[#allocation8 + $0x8] sm:$0xf]
        %v763 = vld [vmem:[#allocation8 + $0xc] sm:$0xf]
        %v764 = vld [vmem:[#allocation8 + $0x10] sm:$0xf]
        %v765 = vld [vmem:[#allocation8 + $0x14] sm:$0xf]
        %v766 = vld [vmem:[#allocation8 + $0x18] sm:$0xf]
        %v767 = vld [vmem:[#allocation8 + $0x1c] sm:$0xf]
        %v768 = vld [vmem:[#allocation8 + $0x20] sm:$0xf]
        %v769 = vld [vmem:[#allocation8 + $0x24] sm:$0xf]
        %v770 = vld [vmem:[#allocation8 + $0x28] sm:$0xf]
        %v771 = vld [vmem:[#allocation8 + $0x2c] sm:$0xf]
        %v772 = vld [vmem:[#allocation8 + $0x30] sm:$0xf]
        %v773 = vld [vmem:[#allocation8 + $0x34] sm:$0xf]
        %v774 = vld [vmem:[#allocation8 + $0x38] sm:$0xf]
        %v775 = vld [vmem:[#allocation8 + $0x3c] sm:$0xf]
        %v792 = vunpack.c.l.b16 %v760
        %v793 = vunpack.c.l.b16 %v761
        %v794 = vunpack.c.l.b16 %v762
        %v795 = vunpack.c.l.b16 %v763
        %v796 = vunpack.c.l.b16 %v764
        %v797 = vunpack.c.l.b16 %v765
        %v798 = vunpack.c.l.b16 %v766
        %v799 = vunpack.c.l.b16 %v767
        %v800 = vunpack.c.l.b16 %v768
        %v801 = vunpack.c.l.b16 %v769
        %v802 = vunpack.c.l.b16 %v770
        %v803 = vunpack.c.l.b16 %v771
        %v804 = vunpack.c.l.b16 %v772
        %v805 = vunpack.c.l.b16 %v773
        %v806 = vunpack.c.l.b16 %v774
        %v807 = vunpack.c.l.b16 %v775
        %v808 = vpack.c.b16 %v793, %v792
        %v809 = vpack.c.b16 %v795, %v794
        %v810 = vpack.c.b16 %v797, %v796
        %v811 = vpack.c.b16 %v799, %v798
        %v812 = vpack.c.b16 %v801, %v800
        %v813 = vpack.c.b16 %v803, %v802
        %v814 = vpack.c.b16 %v805, %v804
        %v815 = vpack.c.b16 %v807, %v806
        %824 = vmatprep.subr.bf16.mxu0 0
        %825 = vmatpush1.bf16.msra.mxu0 %v808
        %826 = vmatprep.subr.bf16.mxu0 0
        %827 = vmatpush1.bf16.msra.mxu0 %v809
        %828 = vmatprep.subr.bf16.mxu0 0
        %829 = vmatpush1.bf16.msra.mxu0 %v810
        %830 = vmatprep.subr.bf16.mxu0 0
        %831 = vmatpush1.bf16.msra.mxu0 %v811
        %832 = vmatprep.subr.bf16.mxu0 0
        %833 = vmatpush1.bf16.msra.mxu0 %v812
        %834 = vmatprep.subr.bf16.mxu0 0
        %835 = vmatpush1.bf16.msra.mxu0 %v813
        %836 = vmatprep.subr.bf16.mxu0 0
        %837 = vmatpush1.bf16.msra.mxu0 %v814
        %838 = vmatprep.subr.bf16.mxu0 0
        %839 = vmatpush1.bf16.msra.mxu0 %v815
        %840 = vmatprep.subr.bf16.mxu0 0
        %841 = vmatpush1.bf16.msra.mxu0 0
        %842 = vmatprep.subr.bf16.mxu0 0
        %843 = vmatpush1.bf16.msra.mxu0 0
        %844 = vmatprep.subr.bf16.mxu0 0
        %845 = vmatpush1.bf16.msra.mxu0 0
        %846 = vmatprep.subr.bf16.mxu0 0
        %847 = vmatpush1.bf16.msra.mxu0 0
        %848 = vmatprep.subr.bf16.mxu0 0
        %849 = vmatpush1.bf16.msra.mxu0 0
        %850 = vmatprep.subr.bf16.mxu0 0
        %851 = vmatpush1.bf16.msra.mxu0 0
        %852 = vmatprep.subr.bf16.mxu0 0
        %853 = vmatpush1.bf16.msra.mxu0 0
        %854 = vmatprep.subr.bf16.mxu0 0
        %855 = vmatpush1.bf16.msra.mxu0 0
        %856 = vmatprep.mubr.bf16.mxu0 0
        %857 = vmatmul.mubr.bf16.gmra.mrb[0].mxu0 %v759
        %v858 = vpop.f32.mrb[0].mxu0
        %v859 = vadd.f32 0.0, %v858
        %v860 = vpop.f32.mrb[0].mxu0
        %v861 = vpop.f32.mrb[0].mxu0
        %v862 = vpop.f32.mrb[0].mxu0
        %863 = vdwg.mxu0
        %v864 = vpack.c.bf16 %v859, %v859
        %v865 = vld [vmem:[#allocation11] sm:$0xf]
        %v866 = vld [vmem:[#allocation11 + $0x4] sm:$0xf]
        %v867 = vld [vmem:[#allocation11 + $0x8] sm:$0xf]
        %v868 = vld [vmem:[#allocation11 + $0xc] sm:$0xf]
        %v869 = vld [vmem:[#allocation11 + $0x10] sm:$0xf]
        %v870 = vld [vmem:[#allocation11 + $0x14] sm:$0xf]
        %v871 = vld [vmem:[#allocation11 + $0x18] sm:$0xf]
        %v872 = vld [vmem:[#allocation11 + $0x1c] sm:$0xf]
        %v873 = vld [vmem:[#allocation11 + $0x20] sm:$0xf]
        %v874 = vld [vmem:[#allocation11 + $0x24] sm:$0xf]
        %v875 = vld [vmem:[#allocation11 + $0x28] sm:$0xf]
        %v876 = vld [vmem:[#allocation11 + $0x2c] sm:$0xf]
        %v877 = vld [vmem:[#allocation11 + $0x30] sm:$0xf]
        %v878 = vld [vmem:[#allocation11 + $0x34] sm:$0xf]
        %v879 = vld [vmem:[#allocation11 + $0x38] sm:$0xf]
        %v880 = vld [vmem:[#allocation11 + $0x3c] sm:$0xf]
        %v881 = vld [vmem:[%s7] sm:$0x1]
        %v883 = vlaneseq
        %v884 = vshrl.u32 %v883, 7
        %v885 = vsub.s32 0, %v884
        %v886 = vrot.slane %v881, %v885
        %v904 = vunpack.c.l.b16 %v865
        %v905 = vunpack.c.l.b16 %v866
        %v906 = vunpack.c.l.b16 %v867
        %v907 = vunpack.c.l.b16 %v868
        %v908 = vunpack.c.l.b16 %v869
        %v909 = vunpack.c.l.b16 %v870
        %v910 = vunpack.c.l.b16 %v871
        %v911 = vunpack.c.l.b16 %v872
        %v912 = vunpack.c.l.b16 %v873
        %v913 = vunpack.c.l.b16 %v874
        %v914 = vunpack.c.l.b16 %v875
        %v915 = vunpack.c.l.b16 %v876
        %v916 = vunpack.c.l.b16 %v877
        %v917 = vunpack.c.l.b16 %v878
        %v918 = vunpack.c.l.b16 %v879
        %v919 = vunpack.c.l.b16 %v880
        %v920 = vpack.c.b16 %v905, %v904
        %v921 = vpack.c.b16 %v907, %v906
        %v922 = vpack.c.b16 %v909, %v908
        %v923 = vpack.c.b16 %v911, %v910
        %v924 = vpack.c.b16 %v913, %v912
        %v925 = vpack.c.b16 %v915, %v914
        %v926 = vpack.c.b16 %v917, %v916
        %v927 = vpack.c.b16 %v919, %v918
        %936 = vmatprep.subr.bf16.mxu0 0
        %937 = vmatpush1.bf16.msra.mxu0 %v920
        %938 = vmatprep.subr.bf16.mxu0 0
        %939 = vmatpush1.bf16.msra.mxu0 %v921
        %940 = vmatprep.subr.bf16.mxu0 0
        %941 = vmatpush1.bf16.msra.mxu0 %v922
        %942 = vmatprep.subr.bf16.mxu0 0
        %943 = vmatpush1.bf16.msra.mxu0 %v923
        %944 = vmatprep.subr.bf16.mxu0 0
        %945 = vmatpush1.bf16.msra.mxu0 %v924
        %946 = vmatprep.subr.bf16.mxu0 0
        %947 = vmatpush1.bf16.msra.mxu0 %v925
        %948 = vmatprep.subr.bf16.mxu0 0
        %949 = vmatpush1.bf16.msra.mxu0 %v926
        %950 = vmatprep.subr.bf16.mxu0 0
        %951 = vmatpush1.bf16.msra.mxu0 %v927
        %952 = vmatprep.subr.bf16.mxu0 0
        %953 = vmatpush1.bf16.msra.mxu0 0
        %954 = vmatprep.subr.bf16.mxu0 0
        %955 = vmatpush1.bf16.msra.mxu0 0
        %956 = vmatprep.subr.bf16.mxu0 0
        %957 = vmatpush1.bf16.msra.mxu0 0
        %958 = vmatprep.subr.bf16.mxu0 0
        %959 = vmatpush1.bf16.msra.mxu0 0
        %960 = vmatprep.subr.bf16.mxu0 0
        %961 = vmatpush1.bf16.msra.mxu0 0
        %962 = vmatprep.subr.bf16.mxu0 0
        %963 = vmatpush1.bf16.msra.mxu0 0
        %964 = vmatprep.subr.bf16.mxu0 0
        %965 = vmatpush1.bf16.msra.mxu0 0
        %966 = vmatprep.subr.bf16.mxu0 0
        %967 = vmatpush1.bf16.msra.mxu0 0
        %968 = vmatprep.mubr.bf16.mxu0 0
        %969 = vmatmul.mubr.bf16.gmra.mrb[0].mxu0 %v864
        %v970 = vpop.f32.mrb[0].mxu0
        %v971 = vadd.f32 %v886, %v970
        %v972 = vpop.f32.mrb[0].mxu0
        %v973 = vpop.f32.mrb[0].mxu0
        %v974 = vpop.f32.mrb[0].mxu0
        %975 = vdwg.mxu0
        %v976 = vadd.f32 %v971, %v521
        %v977 = vmul.f32 %v976, 0.70710677
        %978 = vst [vmem:[%s511] sm:$0xff] %v977
        %s979 = sand.u32 %s271, 1
        %s980 = scalar_lea.sflag [#allocation4], %s979
        %s981 = sand.u32 %s271, 1
        %s982 = smul.addr %s981, 8
        %s983 = scalar_lea.vmem [#allocation13], %s982
        %s984 = sand.u32 %s299, 1
        %s985 = scalar_lea.sflag [#allocation15], %s984
        %s986 = sand.u32 %s299, 1
        %s987 = smul.addr %s986, 8
        %s988 = scalar_lea.vmem [#allocation14], %s987
        // Predicated region
        $region81: #{tpu_custom_call.1} parent=55 // pred_check
          %p989 = pneg %p281
        $region82: #{tpu_custom_call.1} parent=55 // pred_check_branch
          %991 = sbr.rel (%p989) target = $region84
        $region83: #{tpu_custom_call.1} parent=55 // pred_region
          %s993 = ssub.s32 128, 128
          %994 = vsyncadd %s980, %s993
          %s995 = sadd.s32 %s41, %s40
          %s996 = smul.addr %s995, 128
          %s997 = scalar_lea.hbm %s9, %s996
          %s999 = sshll.u32 %s983, 4
          %s1000 = int_to_ptr.vmem [resolvable:$true] %s999
          %1002 = dma.vmem_to_hbm [thread:$0]  %s1000, 128, %s997, %s980
        $region84: #{tpu_custom_call.1} parent=55 // pred_fallthru
          _
        // Predicated region
        $region85: #{tpu_custom_call.1} parent=55 // pred_check
          %p1003 = pneg %p309
        $region86: #{tpu_custom_call.1} parent=55 // pred_check_branch
          %1005 = sbr.rel (%p1003) target = $region88
        $region87: #{tpu_custom_call.1} parent=55 // pred_region
          %s1007 = ssub.s32 128, 128
          %1008 = vsyncadd %s985, %s1007
          %s1009 = sadd.s32 %s41, %s40
          %s1010 = smul.addr %s1009, 128
          %s1011 = scalar_lea.hbm %s10, %s1010
          %s1013 = sshll.u32 %s988, 4
          %s1014 = int_to_ptr.vmem [resolvable:$true] %s1013
          %1016 = dma.vmem_to_hbm [thread:$0]  %s1014, 128, %s1011, %s985
        $region88: #{tpu_custom_call.1} parent=55 // pred_fallthru
          _
      $region56: #{tpu_custom_call.1} parent=5 // pred_fallthru
        _
      %p1017 = scmp.le.s32.totalorder 2, %s31
      // Predicated region
      $region89: #{tpu_custom_call.1} parent=5 // pred_check
        %p1018 = pneg %p1017
      $region90: #{tpu_custom_call.1} parent=5 // pred_check_branch
        %1020 = sbr.rel (%p1018) target = $region92
      $region91: #{tpu_custom_call.1} parent=5 // pred_region
        %s1021 = ssub.s32 %s31, 2
        // Predicated region
        $region93: #{tpu_custom_call.1} parent=91 // pred_check
          %p1022 = pneg %p287
        $region94: #{tpu_custom_call.1} parent=91 // pred_check_branch
          %1024 = sbr.rel (%p1022) target = $region96
        $region95: #{tpu_custom_call.1} parent=91 // pred_region
          %s1025 = sand.u32 %s272, 1
          %s1026 = scalar_lea.sflag [#allocation4], %s1025
          %s1027 = sand.u32 %s272, 1
          %s1028 = smul.addr %s1027, 8
          %s1029 = scalar_lea.vmem [#allocation13], %s1028
          %1030 = dma.done %s1026, 128
        $region96: #{tpu_custom_call.1} parent=91 // pred_fallthru
          _
        // Predicated region
        $region97: #{tpu_custom_call.1} parent=91 // pred_check
          %p1031 = pneg %p315
        $region98: #{tpu_custom_call.1} parent=91 // pred_check_branch
          %1033 = sbr.rel (%p1031) target = $region100
        $region99: #{tpu_custom_call.1} parent=91 // pred_region
          %s1034 = sand.u32 %s300, 1
          %s1035 = scalar_lea.sflag [#allocation15], %s1034
          %s1036 = sand.u32 %s300, 1
          %s1037 = smul.addr %s1036, 8
          %s1038 = scalar_lea.vmem [#allocation14], %s1037
          %1039 = dma.done %s1035, 128
        $region100: #{tpu_custom_call.1} parent=91 // pred_fallthru
          _
      $region92: #{tpu_custom_call.1} parent=5 // pred_fallthru
        _
    $region6: #{tpu_custom_call.1} parent=1 // loop_footer
      %s35 = sadd.s32 1, %s31
    $region7: #{tpu_custom_call.1} parent=1 // loop_footer_branch
      %30 = sbr.rel target = $region3
    $region8: #{tpu_custom_call.1} parent=1 // loop_exit
      _
    %1040 = vsyncpa [#allocation3], 1
    %s1041 = scalar_lea.sflag [#allocation3], 1
    %1042 = vsyncpa %s1041, 1
    %1043 = vsyncpa [#allocation6], 1
    %s1044 = scalar_lea.sflag [#allocation6], 1
    %1045 = vsyncpa %s1044, 1
    %1046 = vsyncpa [#allocation9], 1
    %1047 = vsyncpa [#allocation12], 1
    %1048 = vsyncpa [#allocation4], 1
    %s1049 = scalar_lea.sflag [#allocation4], 1
    %1050 = vsyncpa %s1049, 1
    %1051 = vsyncpa [#allocation15], 1
    %s1052 = scalar_lea.sflag [#allocation15], 1
    %1053 = vsyncpa %s1052, 1

// kernel: tpu_custom_call.1
$region0: #{tpu_custom_call.1}
  #allocation0 [shape = 'u32[]', space=smem, size = 0x4, offset = 0x4, fixed_abs, tag = 'smem constant byte address 0x4 - core index']
  #allocation1 [shape = 'u32[144,128]{1,0:T(1,128)}', space=vmem, size = 0x12000, scoped, tag = 'internal scratch']
  %s0 = inlined_call_operand.hbm [shape: bf16[2,8,128], index: 0, kind: input, shape index: {}]
  %s1 = inlined_call_operand.hbm [shape: bf16[2,8,128], index: 1, kind: input, shape index: {}]
  %s2 = inlined_call_operand.hbm [shape: bf16[2,128,128], index: 2, kind: input, shape index: {}]
  %s3 = inlined_call_operand.hbm [shape: bf16[2,128,128], index: 3, kind: input, shape index: {}]
  %s4 = inlined_call_operand.hbm [shape: bf16[128,128], index: 4, kind: input, shape index: {}]
  %s5 = inlined_call_operand.vmem [shape: f32[1,128], index: 5, kind: input, shape index: {}]
  %s6 = inlined_call_operand.hbm [shape: bf16[128,128], index: 6, kind: input, shape index: {}]
  %s7 = inlined_call_operand.vmem [shape: f32[1,128], index: 7, kind: input, shape index: {}]
  %s8 = inlined_call_operand.vmem [shape: f32[1,128], index: 8, kind: input, shape index: {}]
  %s9 = inlined_call_operand.hbm [shape: f32[2,8,128], index: 9, kind: output, shape index: {0}]
  %s10 = inlined_call_operand.hbm [shape: f32[2,8,128], index: 10, kind: output, shape index: {1}]
  %11 = xla_tuple %s9, %s10
  %s12 = sld [smem:[#allocation0]]
  $region101: #{tpu_custom_call.1} parent=0
    _
  %s14 = ssub.s32 1, %s12
  %s15 = scalar_select 0, %s14, %s12
  $region1: #{tpu_custom_call.1} parent=0
    #allocation2 [shape = 'u8[4096]{0}', space=vmem, size = 0x1000, scoped, tag = 'input window, operand 0']
    #allocation3 [shape = 's32[2]{0}', space=sflag, size = 0x8, scoped, tag = 'scoped memory for tpu_custom_call.1']
    #allocation4 [shape = 's32[2]{0}', space=sflag, size = 0x8, scoped, tag = 'scoped memory for tpu_custom_call.1']
    #allocation5 [shape = 'u8[4096]{0}', space=vmem, size = 0x1000, scoped, tag = 'input window, operand 1']
    #allocation6 [shape = 's32[2]{0}', space=sflag, size = 0x8, scoped, tag = 'scoped memory for tpu_custom_call.1']
    #allocation7 [shape = 'u8[65536]{0}', space=vmem, size = 0x10000, scoped, tag = 'input window, operand 2']
    #allocation8 [shape = 'u8[65536]{0}', space=vmem, size = 0x10000, scoped, tag = 'input window, operand 3']
    #allocation9 [shape = 's32[2]{0}', space=sflag, size = 0x8, scoped, tag = 'scoped memory for tpu_custom_call.1']
    #allocation10 [shape = 'u8[32768]{0}', space=vmem, size = 0x8000, scoped, tag = 'input window, operand 4, single buffered']
    #allocation11 [shape = 'u8[32768]{0}', space=vmem, size = 0x8000, scoped, tag = 'input window, operand 6, single buffered']
    #allocation12 [shape = 's32[1]{0}', space=sflag, size = 0x4, scoped, tag = 'scoped memory for tpu_custom_call.1']
    #allocation13 [shape = 'u8[8192]{0}', space=vmem, size = 0x2000, scoped, tag = 'output window, operand 0']
    #allocation14 [shape = 'u8[8192]{0}', space=vmem, size = 0x2000, scoped, tag = 'output window, operand 1']
    #allocation15 [shape = 's32[2]{0}', space=sflag, size = 0x8, scoped, tag = 'scoped memory for tpu_custom_call.1']
    %16 = vsyncpa [#allocation3], 0
    %s17 = scalar_lea.sflag [#allocation3], 1
    %18 = vsyncpa %s17, 0
    %19 = vsyncpa [#allocation6], 0
    %s20 = scalar_lea.sflag [#allocation6], 1
    %21 = vsyncpa %s20, 0
    %22 = vsyncpa [#allocation9], 0
    %s23 = scalar_lea.sflag [#allocation9], 1
    %24 = vsyncpa %s23, 0
    %25 = vsyncpa [#allocation12], 0
    %26 = vsyncpa [#allocation4], 0
    %s27 = scalar_lea.sflag [#allocation4], 1
    %28 = vsyncpa %s27, 0
    %29 = vsyncpa [#allocation15], 0
    %s30 = scalar_lea.sflag [#allocation15], 1
    %31 = vsyncpa %s30, 0
    loop: start=0, step=1, limit=4
    $region2: #{tpu_custom_call.1} parent=1 // loop_pre_header
      _
    $region3: #{tpu_custom_call.1} parent=1 // loop_header
      %s33 = sphi 0, %s37
      %p34 = scmp.ge.s32.totalorder %s33, 4
      %s40 = sphi 0, %s52
      %s41 = sphi 0, %s48
      %s42 = sphi 0, %s40
      %s43 = sphi 0, %s41
      %s44 = sphi 0, %s42
      %s45 = sphi 0, %s43
      %s57 = sphi 0, %s59
      %s60 = sphi 0, %s57
      %s61 = sphi 0, %s60
      %s77 = sphi 0, %s61
      %s85 = sphi 0, %s87
      %s88 = sphi 0, %s85
      %s89 = sphi 0, %s88
      %s105 = sphi 0, %s89
      %s111 = sphi 0, %s113
      %s114 = sphi 0, %s111
      %s115 = sphi 0, %s114
      %s131 = sphi 0, %s115
      %s137 = sphi 0, %s139
      %s140 = sphi 0, %s137
      %s141 = sphi 0, %s140
      %s157 = sphi 0, %s141
      %s161 = sphi 0, %s161
      %s163 = sphi 0, %s161
      %s164 = sphi 0, %s163
      %s178 = sphi 0, %s164
      %s182 = sphi 0, %s182
      %s184 = sphi 0, %s182
      %s185 = sphi 0, %s184
      %s199 = sphi 0, %s185
      %s203 = sphi 0, %s203
      %s205 = sphi 0, %s203
      %s206 = sphi 0, %s205
      %s220 = sphi 0, %s206
      %s224 = sphi 0, %s224
      %s226 = sphi 0, %s224
      %s227 = sphi 0, %s226
      %s241 = sphi 0, %s227
      %s245 = sphi 0, %s245
      %s247 = sphi 0, %s245
      %s248 = sphi 0, %s247
      %s262 = sphi 0, %s248
      %s270 = sphi 0, %s272
      %s273 = sphi 0, %s270
      %s274 = sphi 0, %s273
      %s290 = sphi 0, %s274
      %s298 = sphi 0, %s300
      %s301 = sphi 0, %s298
      %s302 = sphi 0, %s301
      %s318 = sphi 0, %s302
    $region4: #{tpu_custom_call.1} parent=1 // loop_header_branch
      %36 = sbr.rel (%p34) target = $region8
    $region5: #{tpu_custom_call.1} parent=1 // loop_body
      %s38 = ssub.s32 %s33, 1
      %s39 = ssub.s32 %s33, 2
      %s46 = sadd.s32 1, %s41
      %p47 = scmp.ge.s32.totalorder %s46, 1
      %s48 = scalar_select %p47, 0, %s46
      %s49 = sadd.s32 1, %s40
      %s50 = scalar_select %p47, %s49, %s40
      %p51 = scmp.ge.s32.totalorder %s50, 2
      %s52 = scalar_select %p51, 0, %s50
      %s53 = ssub.s32 %s40, %s52
      %s54 = ssub.s32 %s41, %s48
      %s55 = sor.u32 %s53, %s54
      %p56 = scmp.eq.s32.totalorder %s55, 0
      %s58 = sadd.s32 %s57, 1
      %s59 = scalar_select %p56, %s57, %s58
      %p62 = pneg %p56
      %p63 = scmp.eq.s32.totalorder %s33, 1
      %p64 = por %p62, %p63
      %p65 = scmp.ne.s32.totalorder %s57, %s60
      %p66 = scmp.eq.s32.totalorder %s33, 0
      %p67 = por %p65, %p66
      %p68 = scmp.ne.s32.totalorder %s57, %s60
      %p69 = scmp.eq.s32.totalorder %s38, 1
      %p70 = por %p68, %p69
      %p71 = scmp.ne.s32.totalorder %s60, %s61
      %p72 = scmp.eq.s32.totalorder %s38, 0
      %p73 = por %p71, %p72
      %p74 = scmp.ne.s32.totalorder %s60, %s61
      %p75 = scmp.eq.s32.totalorder %s39, 1
      %p76 = por %p74, %p75
      %p78 = scmp.ne.s32.totalorder %s61, %s77
      %p79 = scmp.eq.s32.totalorder %s39, 0
      %p80 = por %p78, %p79
      %s81 = ssub.s32 %s40, %s52
      %s82 = ssub.s32 %s41, %s48
      %s83 = sor.u32 %s81, %s82
      %p84 = scmp.eq.s32.totalorder %s83, 0
      %s86 = sadd.s32 %s85, 1
      %s87 = scalar_select %p84, %s85, %s86
      %p90 = pneg %p84
      %p91 = scmp.eq.s32.totalorder %s33, 1
      %p92 = por %p90, %p91
      %p93 = scmp.ne.s32.totalorder %s85, %s88
      %p94 = scmp.eq.s32.totalorder %s33, 0
      %p95 = por %p93, %p94
      %p96 = scmp.ne.s32.totalorder %s85, %s88
      %p97 = scmp.eq.s32.totalorder %s38, 1
      %p98 = por %p96, %p97
      %p99 = scmp.ne.s32.totalorder %s88, %s89
      %p100 = scmp.eq.s32.totalorder %s38, 0
      %p101 = por %p99, %p100
      %p102 = scmp.ne.s32.totalorder %s88, %s89
      %p103 = scmp.eq.s32.totalorder %s39, 1
      %p104 = por %p102, %p103
      %p106 = scmp.ne.s32.totalorder %s89, %s105
      %p107 = scmp.eq.s32.totalorder %s39, 0
      %p108 = por %p106, %p107
      %s109 = ssub.s32 %s40, %s52
      %p110 = scmp.eq.s32.totalorder %s109, 0
      %s112 = sadd.s32 %s111, 1
      %s113 = scalar_select %p110, %s111, %s112
      %p116 = pneg %p110
      %p117 = scmp.eq.s32.totalorder %s33, 1
      %p118 = por %p116, %p117
      %p119 = scmp.ne.s32.totalorder %s111, %s114
      %p120 = scmp.eq.s32.totalorder %s33, 0
      %p121 = por %p119, %p120
      %p122 = scmp.ne.s32.totalorder %s111, %s114
      %p123 = scmp.eq.s32.totalorder %s38, 1
      %p124 = por %p122, %p123
      %p125 = scmp.ne.s32.totalorder %s114, %s115
      %p126 = scmp.eq.s32.totalorder %s38, 0
      %p127 = por %p125, %p126
      %p128 = scmp.ne.s32.totalorder %s114, %s115
      %p129 = scmp.eq.s32.totalorder %s39, 1
      %p130 = por %p128, %p129
      %p132 = scmp.ne.s32.totalorder %s115, %s131
      %p133 = scmp.eq.s32.totalorder %s39, 0
      %p134 = por %p132, %p133
      %s135 = ssub.s32 %s40, %s52
      %p136 = scmp.eq.s32.totalorder %s135, 0
      %s138 = sadd.s32 %s137, 1
      %s139 = scalar_select %p136, %s137, %s138
      %p142 = pneg %p136
      %p143 = scmp.eq.s32.totalorder %s33, 1
      %p144 = por %p142, %p143
      %p145 = scmp.ne.s32.totalorder %s137, %s140
      %p146 = scmp.eq.s32.totalorder %s33, 0
      %p147 = por %p145, %p146
      %p148 = scmp.ne.s32.totalorder %s137, %s140
      %p149 = scmp.eq.s32.totalorder %s38, 1
      %p150 = por %p148, %p149
      %p151 = scmp.ne.s32.totalorder %s140, %s141
      %p152 = scmp.eq.s32.totalorder %s38, 0
      %p153 = por %p151, %p152
      %p154 = scmp.ne.s32.totalorder %s140, %s141
      %p155 = scmp.eq.s32.totalorder %s39, 1
      %p156 = por %p154, %p155
      %p158 = scmp.ne.s32.totalorder %s141, %s157
      %p159 = scmp.eq.s32.totalorder %s39, 0
      %p160 = por %p158, %p159
      %s162 = sadd.s32 %s161, 1
      %p165 = scmp.eq.s32.totalorder %s33, 1
      %p166 = scmp.ne.s32.totalorder %s161, %s163
      %p167 = scmp.eq.s32.totalorder %s33, 0
      %p168 = por %p166, %p167
      %p169 = scmp.ne.s32.totalorder %s161, %s163
      %p170 = scmp.eq.s32.totalorder %s38, 1
      %p171 = por %p169, %p170
      %p172 = scmp.ne.s32.totalorder %s163, %s164
      %p173 = scmp.eq.s32.totalorder %s38, 0
      %p174 = por %p172, %p173
      %p175 = scmp.ne.s32.totalorder %s163, %s164
      %p176 = scmp.eq.s32.totalorder %s39, 1
      %p177 = por %p175, %p176
      %p179 = scmp.ne.s32.totalorder %s164, %s178
      %p180 = scmp.eq.s32.totalorder %s39, 0
      %p181 = por %p179, %p180
      %s183 = sadd.s32 %s182, 1
      %p186 = scmp.eq.s32.totalorder %s33, 1
      %p187 = scmp.ne.s32.totalorder %s182, %s184
      %p188 = scmp.eq.s32.totalorder %s33, 0
      %p189 = por %p187, %p188
      %p190 = scmp.ne.s32.totalorder %s182, %s184
      %p191 = scmp.eq.s32.totalorder %s38, 1
      %p192 = por %p190, %p191
      %p193 = scmp.ne.s32.totalorder %s184, %s185
      %p194 = scmp.eq.s32.totalorder %s38, 0
      %p195 = por %p193, %p194
      %p196 = scmp.ne.s32.totalorder %s184, %s185
      %p197 = scmp.eq.s32.totalorder %s39, 1
      %p198 = por %p196, %p197
      %p200 = scmp.ne.s32.totalorder %s185, %s199
      %p201 = scmp.eq.s32.totalorder %s39, 0
      %p202 = por %p200, %p201
      %s204 = sadd.s32 %s203, 1
      %p207 = scmp.eq.s32.totalorder %s33, 1
      %p208 = scmp.ne.s32.totalorder %s203, %s205
      %p209 = scmp.eq.s32.totalorder %s33, 0
      %p210 = por %p208, %p209
      %p211 = scmp.ne.s32.totalorder %s203, %s205
      %p212 = scmp.eq.s32.totalorder %s38, 1
      %p213 = por %p211, %p212
      %p214 = scmp.ne.s32.totalorder %s205, %s206
      %p215 = scmp.eq.s32.totalorder %s38, 0
      %p216 = por %p214, %p215
      %p217 = scmp.ne.s32.totalorder %s205, %s206
      %p218 = scmp.eq.s32.totalorder %s39, 1
      %p219 = por %p217, %p218
      %p221 = scmp.ne.s32.totalorder %s206, %s220
      %p222 = scmp.eq.s32.totalorder %s39, 0
      %p223 = por %p221, %p222
      %s225 = sadd.s32 %s224, 1
      %p228 = scmp.eq.s32.totalorder %s33, 1
      %p229 = scmp.ne.s32.totalorder %s224, %s226
      %p230 = scmp.eq.s32.totalorder %s33, 0
      %p231 = por %p229, %p230
      %p232 = scmp.ne.s32.totalorder %s224, %s226
      %p233 = scmp.eq.s32.totalorder %s38, 1
      %p234 = por %p232, %p233
      %p235 = scmp.ne.s32.totalorder %s226, %s227
      %p236 = scmp.eq.s32.totalorder %s38, 0
      %p237 = por %p235, %p236
      %p238 = scmp.ne.s32.totalorder %s226, %s227
      %p239 = scmp.eq.s32.totalorder %s39, 1
      %p240 = por %p238, %p239
      %p242 = scmp.ne.s32.totalorder %s227, %s241
      %p243 = scmp.eq.s32.totalorder %s39, 0
      %p244 = por %p242, %p243
      %s246 = sadd.s32 %s245, 1
      %p249 = scmp.eq.s32.totalorder %s33, 1
      %p250 = scmp.ne.s32.totalorder %s245, %s247
      %p251 = scmp.eq.s32.totalorder %s33, 0
      %p252 = por %p250, %p251
      %p253 = scmp.ne.s32.totalorder %s245, %s247
      %p254 = scmp.eq.s32.totalorder %s38, 1
      %p255 = por %p253, %p254
      %p256 = scmp.ne.s32.totalorder %s247, %s248
      %p257 = scmp.eq.s32.totalorder %s38, 0
      %p258 = por %p256, %p257
      %p259 = scmp.ne.s32.totalorder %s247, %s248
      %p260 = scmp.eq.s32.totalorder %s39, 1
      %p261 = por %p259, %p260
      %p263 = scmp.ne.s32.totalorder %s248, %s262
      %p264 = scmp.eq.s32.totalorder %s39, 0
      %p265 = por %p263, %p264
      %s266 = ssub.s32 %s40, %s52
      %s267 = ssub.s32 %s41, %s48
      %s268 = sor.u32 %s266, %s267
      %p269 = scmp.eq.s32.totalorder %s268, 0
      %s271 = sadd.s32 %s270, 1
      %s272 = scalar_select %p269, %s270, %s271
      %p275 = pneg %p269
      %p276 = scmp.eq.s32.totalorder %s33, 1
      %p277 = por %p275, %p276
      %p278 = scmp.ne.s32.totalorder %s270, %s273
      %p279 = scmp.eq.s32.totalorder %s33, 0
      %p280 = por %p278, %p279
      %p281 = scmp.ne.s32.totalorder %s270, %s273
      %p282 = scmp.eq.s32.totalorder %s38, 1
      %p283 = por %p281, %p282
      %p284 = scmp.ne.s32.totalorder %s273, %s274
      %p285 = scmp.eq.s32.totalorder %s38, 0
      %p286 = por %p284, %p285
      %p287 = scmp.ne.s32.totalorder %s273, %s274
      %p288 = scmp.eq.s32.totalorder %s39, 1
      %p289 = por %p287, %p288
      %p291 = scmp.ne.s32.totalorder %s274, %s290
      %p292 = scmp.eq.s32.totalorder %s39, 0
      %p293 = por %p291, %p292
      %s294 = ssub.s32 %s40, %s52
      %s295 = ssub.s32 %s41, %s48
      %s296 = sor.u32 %s294, %s295
      %p297 = scmp.eq.s32.totalorder %s296, 0
      %s299 = sadd.s32 %s298, 1
      %s300 = scalar_select %p297, %s298, %s299
      %p303 = pneg %p297
      %p304 = scmp.eq.s32.totalorder %s33, 1
      %p305 = por %p303, %p304
      %p306 = scmp.ne.s32.totalorder %s298, %s301
      %p307 = scmp.eq.s32.totalorder %s33, 0
      %p308 = por %p306, %p307
      %p309 = scmp.ne.s32.totalorder %s298, %s301
      %p310 = scmp.eq.s32.totalorder %s38, 1
      %p311 = por %p309, %p310
      %p312 = scmp.ne.s32.totalorder %s301, %s302
      %p313 = scmp.eq.s32.totalorder %s38, 0
      %p314 = por %p312, %p313
      %p315 = scmp.ne.s32.totalorder %s301, %s302
      %p316 = scmp.eq.s32.totalorder %s39, 1
      %p317 = por %p315, %p316
      %p319 = scmp.ne.s32.totalorder %s302, %s318
      %p320 = scmp.eq.s32.totalorder %s39, 0
      %p321 = por %p319, %p320
      %p322 = scmp.le.s32.totalorder 1, %s33
      %p323 = scmp.lt.s32.totalorder %s33, 3
      %p324 = pnand %p322, %p323
      %p325 = pneg %p324
      // Predicated region
      $region9: #{tpu_custom_call.1} parent=5 // pred_check
        _
      $region10: #{tpu_custom_call.1} parent=5 // pred_check_branch
        %327 = sbr.rel (%p324) target = $region12
      $region11: #{tpu_custom_call.1} parent=5 // pred_region
        %s328 = ssub.s32 %s33, 1
        // Predicated region
        $region13: #{tpu_custom_call.1} parent=11 // pred_check
          %p329 = pneg %p174
        $region14: #{tpu_custom_call.1} parent=11 // pred_check_branch
          %331 = sbr.rel (%p329) target = $region16
        $region15: #{tpu_custom_call.1} parent=11 // pred_region
          %s333 = ssub.s32 1024, 1024
          %334 = vsyncadd [#allocation9], %s333
          %s335 = sshll.u32 [#allocation10], 4
          %s336 = int_to_ptr.vmem [resolvable:$true] %s335
          %341 = dma.hbm_to_vmem [thread:$0]  %s4, 1024, %s336, [#allocation9], 64, 64, 4
        $region16: #{tpu_custom_call.1} parent=11 // pred_fallthru
          _
        // Predicated region
        $region17: #{tpu_custom_call.1} parent=11 // pred_check
          %p342 = pneg %p195
        $region18: #{tpu_custom_call.1} parent=11 // pred_check_branch
          %344 = sbr.rel (%p342) target = $region20
        $region19: #{tpu_custom_call.1} parent=11 // pred_region
          _
        $region20: #{tpu_custom_call.1} parent=11 // pred_fallthru
          _
        // Predicated region
        $region21: #{tpu_custom_call.1} parent=11 // pred_check
          %p345 = pneg %p216
        $region22: #{tpu_custom_call.1} parent=11 // pred_check_branch
          %347 = sbr.rel (%p345) target = $region24
        $region23: #{tpu_custom_call.1} parent=11 // pred_region
          %s349 = ssub.s32 1024, 1024
          %350 = vsyncadd [#allocation12], %s349
          %s351 = sshll.u32 [#allocation11], 4
          %s352 = int_to_ptr.vmem [resolvable:$true] %s351
          %357 = dma.hbm_to_vmem [thread:$0]  %s6, 1024, %s352, [#allocation12], 64, 64, 4
        $region24: #{tpu_custom_call.1} parent=11 // pred_fallthru
          _
        // Predicated region
        $region25: #{tpu_custom_call.1} parent=11 // pred_check
          %p358 = pneg %p237
        $region26: #{tpu_custom_call.1} parent=11 // pred_check_branch
          %360 = sbr.rel (%p358) target = $region28
        $region27: #{tpu_custom_call.1} parent=11 // pred_region
          _
        $region28: #{tpu_custom_call.1} parent=11 // pred_fallthru
          _
        // Predicated region
        $region29: #{tpu_custom_call.1} parent=11 // pred_check
          %p361 = pneg %p258
        $region30: #{tpu_custom_call.1} parent=11 // pred_check_branch
          %363 = sbr.rel (%p361) target = $region32
        $region31: #{tpu_custom_call.1} parent=11 // pred_region
          _
        $region32: #{tpu_custom_call.1} parent=11 // pred_fallthru
          _
      $region12: #{tpu_custom_call.1} parent=5 // pred_fallthru
        _
      %p364 = scmp.lt.s32.totalorder %s33, 2
      // Predicated region
      $region33: #{tpu_custom_call.1} parent=5 // pred_check
        %p365 = pneg %p364
      $region34: #{tpu_custom_call.1} parent=5 // pred_check_branch
        %367 = sbr.rel (%p365) target = $region36
      $region35: #{tpu_custom_call.1} parent=5 // pred_region
        // Predicated region
        $region37: #{tpu_custom_call.1} parent=35 // pred_check
          %p368 = pneg %p67
        $region38: #{tpu_custom_call.1} parent=35 // pred_check_branch
          %370 = sbr.rel (%p368) target = $region40
        $region39: #{tpu_custom_call.1} parent=35 // pred_region
          %s371 = sand.u32 %s57, 1
          %s372 = scalar_lea.sflag [#allocation3], %s371
          %s373 = sand.u32 %s57, 1
          %s374 = smul.addr %s373, 4
          %s375 = scalar_lea.vmem [#allocation2], %s374
          %s377 = ssub.s32 64, 64
          %378 = vsyncadd %s372, %s377
          %s379 = sadd.s32 %s41, %s40
          %s380 = smul.addr %s379, 64
          %s381 = scalar_lea.hbm %s0, %s380
          %s383 = sshll.u32 %s375, 4
          %s384 = int_to_ptr.vmem [resolvable:$true] %s383
          %386 = dma.hbm_to_vmem [thread:$0]  %s381, 64, %s384, %s372
        $region40: #{tpu_custom_call.1} parent=35 // pred_fallthru
          _
        // Predicated region
        $region41: #{tpu_custom_call.1} parent=35 // pred_check
          %p387 = pneg %p95
        $region42: #{tpu_custom_call.1} parent=35 // pred_check_branch
          %389 = sbr.rel (%p387) target = $region44
        $region43: #{tpu_custom_call.1} parent=35 // pred_region
          %s390 = sand.u32 %s33, 1
          %s391 = scalar_lea.sflag [#allocation6], %s390
          %s392 = sand.u32 %s85, 1
          %s393 = smul.addr %s392, 4
          %s394 = scalar_lea.vmem [#allocation5], %s393
          %s396 = ssub.s32 64, 64
          %397 = vsyncadd %s391, %s396
          %s398 = sadd.s32 %s41, %s40
          %s399 = smul.addr %s398, 64
          %s400 = scalar_lea.hbm %s1, %s399
          %s402 = sshll.u32 %s394, 4
          %s403 = int_to_ptr.vmem [resolvable:$true] %s402
          %405 = dma.hbm_to_vmem [thread:$0]  %s400, 64, %s403, %s391
        $region44: #{tpu_custom_call.1} parent=35 // pred_fallthru
          _
        // Predicated region
        $region45: #{tpu_custom_call.1} parent=35 // pred_check
          %p406 = pneg %p121
        $region46: #{tpu_custom_call.1} parent=35 // pred_check_branch
          %408 = sbr.rel (%p406) target = $region48
        $region47: #{tpu_custom_call.1} parent=35 // pred_region
          %s409 = sand.u32 %s33, 1
          %s410 = scalar_lea.sflag [#allocation6], %s409
          %s411 = sand.u32 %s111, 1
          %s412 = smul.addr %s411, 64
          %s413 = scalar_lea.vmem [#allocation7], %s412
          %s415 = ssub.s32 1024, 1024
          %416 = vsyncadd %s410, %s415
          %s417 = smul.addr %s40, 16
          %s418 = smul.addr %s417, 64
          %s419 = scalar_lea.hbm %s2, %s418
          %s420 = sshll.u32 %s413, 4
          %s421 = int_to_ptr.vmem [resolvable:$true] %s420
          %426 = dma.hbm_to_vmem [thread:$0]  %s419, 1024, %s421, %s410, 64, 64, 4
        $region48: #{tpu_custom_call.1} parent=35 // pred_fallthru
          _
        // Predicated region
        $region49: #{tpu_custom_call.1} parent=35 // pred_check
          %p427 = pneg %p147
        $region50: #{tpu_custom_call.1} parent=35 // pred_check_branch
          %429 = sbr.rel (%p427) target = $region52
        $region51: #{tpu_custom_call.1} parent=35 // pred_region
          %s430 = sand.u32 %s33, 1
          %s431 = scalar_lea.sflag [#allocation9], %s430
          %s432 = sand.u32 %s137, 1
          %s433 = smul.addr %s432, 64
          %s434 = scalar_lea.vmem [#allocation8], %s433
          %s436 = ssub.s32 1024, 1024
          %437 = vsyncadd %s431, %s436
          %s438 = smul.addr %s40, 16
          %s439 = smul.addr %s438, 64
          %s440 = scalar_lea.hbm %s3, %s439
          %s441 = sshll.u32 %s434, 4
          %s442 = int_to_ptr.vmem [resolvable:$true] %s441
          %447 = dma.hbm_to_vmem [thread:$0]  %s440, 1024, %s442, %s431, 64, 64, 4
        $region52: #{tpu_custom_call.1} parent=35 // pred_fallthru
          _
      $region36: #{tpu_custom_call.1} parent=5 // pred_fallthru
        _
      %p448 = scmp.le.s32.totalorder 1, %s33
      %p449 = scmp.lt.s32.totalorder %s33, 3
      %p450 = pnand %p448, %p449
      %p451 = pneg %p450
      // Predicated region
      $region53: #{tpu_custom_call.1} parent=5 // pred_check
        _
      $region54: #{tpu_custom_call.1} parent=5 // pred_check_branch
        %453 = sbr.rel (%p450) target = $region56
      $region55: #{tpu_custom_call.1} parent=5 // pred_region
        %s454 = ssub.s32 %s33, 1
        %s455 = sand.u32 %s60, 1
        %s456 = scalar_lea.sflag [#allocation3], %s455
        %s457 = sand.u32 %s60, 1
        %s458 = smul.addr %s457, 4
        %s459 = scalar_lea.vmem [#allocation2], %s458
        // Predicated region
        $region57: #{tpu_custom_call.1} parent=55 // pred_check
          %p460 = pneg %p73
        $region58: #{tpu_custom_call.1} parent=55 // pred_check_branch
          %462 = sbr.rel (%p460) target = $region60
        $region59: #{tpu_custom_call.1} parent=55 // pred_region
          %463 = dma.done %s456, 64
        $region60: #{tpu_custom_call.1} parent=55 // pred_fallthru
          _
        %s464 = sand.u32 %s38, 1
        %s465 = scalar_lea.sflag [#allocation6], %s464
        %s466 = sand.u32 %s88, 1
        %s467 = smul.addr %s466, 4
        %s468 = scalar_lea.vmem [#allocation5], %s467
        // Predicated region
        $region61: #{tpu_custom_call.1} parent=55 // pred_check
          %p469 = pneg %p101
        $region62: #{tpu_custom_call.1} parent=55 // pred_check_branch
          %471 = sbr.rel (%p469) target = $region64
        $region63: #{tpu_custom_call.1} parent=55 // pred_region
          %472 = dma.done %s465, 64
        $region64: #{tpu_custom_call.1} parent=55 // pred_fallthru
          _
        %s473 = sand.u32 %s38, 1
        %s474 = scalar_lea.sflag [#allocation6], %s473
        %s475 = sand.u32 %s114, 1
        %s476 = smul.addr %s475, 64
        %s477 = scalar_lea.vmem [#allocation7], %s476
        // Predicated region
        $region65: #{tpu_custom_call.1} parent=55 // pred_check
          %p478 = pneg %p127
        $region66: #{tpu_custom_call.1} parent=55 // pred_check_branch
          %480 = sbr.rel (%p478) target = $region68
        $region67: #{tpu_custom_call.1} parent=55 // pred_region
          %481 = dma.done %s474, 1024
        $region68: #{tpu_custom_call.1} parent=55 // pred_fallthru
          _
        %s482 = sand.u32 %s38, 1
        %s483 = scalar_lea.sflag [#allocation9], %s482
        %s484 = sand.u32 %s140, 1
        %s485 = smul.addr %s484, 64
        %s486 = scalar_lea.vmem [#allocation8], %s485
        // Predicated region
        $region69: #{tpu_custom_call.1} parent=55 // pred_check
          %p487 = pneg %p153
        $region70: #{tpu_custom_call.1} parent=55 // pred_check_branch
          %489 = sbr.rel (%p487) target = $region72
        $region71: #{tpu_custom_call.1} parent=55 // pred_region
          %490 = dma.done %s483, 1024
        $region72: #{tpu_custom_call.1} parent=55 // pred_fallthru
          _
        // Predicated region
        $region73: #{tpu_custom_call.1} parent=55 // pred_check
          %p491 = pneg %p174
        $region74: #{tpu_custom_call.1} parent=55 // pred_check_branch
          %493 = sbr.rel (%p491) target = $region76
        $region75: #{tpu_custom_call.1} parent=55 // pred_region
          %494 = dma.done [#allocation9], 1024
        $region76: #{tpu_custom_call.1} parent=55 // pred_fallthru
          _
        // Predicated region
        $region77: #{tpu_custom_call.1} parent=55 // pred_check
          %p495 = pneg %p216
        $region78: #{tpu_custom_call.1} parent=55 // pred_check_branch
          %497 = sbr.rel (%p495) target = $region80
        $region79: #{tpu_custom_call.1} parent=55 // pred_region
          %498 = dma.done [#allocation12], 1024
        $region80: #{tpu_custom_call.1} parent=55 // pred_fallthru
          _
        %s499 = sand.u32 %s60, 1
        %s500 = scalar_lea.sflag [#allocation3], %s499
        %s501 = sand.u32 %s60, 1
        %s502 = smul.addr %s501, 4
        %s503 = scalar_lea.vmem [#allocation2], %s502
        %p504 = pneg %p73
        %p505 = pneg %p70
        %s506 = sand.u32 %s38, 1
        %s507 = scalar_lea.sflag [#allocation6], %s506
        %s508 = sand.u32 %s88, 1
        %s509 = smul.addr %s508, 4
        %s510 = scalar_lea.vmem [#allocation5], %s509
        %p511 = pneg %p101
        %p512 = pneg %p98
        %s513 = sand.u32 %s38, 1
        %s514 = scalar_lea.sflag [#allocation6], %s513
        %s515 = sand.u32 %s114, 1
        %s516 = smul.addr %s515, 64
        %s517 = scalar_lea.vmem [#allocation7], %s516
        %p518 = pneg %p127
        %p519 = pneg %p124
        %s520 = sand.u32 %s38, 1
        %s521 = scalar_lea.sflag [#allocation9], %s520
        %s522 = sand.u32 %s140, 1
        %s523 = smul.addr %s522, 64
        %s524 = scalar_lea.vmem [#allocation8], %s523
        %p525 = pneg %p153
        %p526 = pneg %p150
        %p527 = pneg %p174
        %p528 = pneg %p171
        %p529 = pneg %p195
        %p530 = pneg %p192
        %p531 = pneg %p216
        %p532 = pneg %p213
        %p533 = pneg %p237
        %p534 = pneg %p234
        %p535 = pneg %p258
        %p536 = pneg %p255
        %p537 = pneg %p286
        %p538 = pneg %p283
        %s539 = sand.u32 %s273, 1
        %s540 = scalar_lea.sflag [#allocation4], %s539
        %s541 = sand.u32 %s273, 1
        %s542 = smul.addr %s541, 8
        %s543 = scalar_lea.vmem [#allocation13], %s542
        %p544 = pneg %p314
        %p545 = pneg %p311
        %s546 = sand.u32 %s301, 1
        %s547 = scalar_lea.sflag [#allocation15], %s546
        %s548 = sand.u32 %s301, 1
        %s549 = smul.addr %s548, 8
        %s550 = scalar_lea.vmem [#allocation14], %s549
        %v552 = vld [vmem:[%s459] sm:$0xf]
        %v553 = vunpack.c.l.bf16 %v552
        %v554 = vld [vmem:[%s468] sm:$0xf]
        %v555 = vunpack.c.l.bf16 %v554
        %v556 = vld [vmem:[#allocation10] sm:$0xf]
        %v557 = vld [vmem:[#allocation10 + $0x4] sm:$0xf]
        %v558 = vld [vmem:[#allocation10 + $0x8] sm:$0xf]
        %v559 = vld [vmem:[#allocation10 + $0xc] sm:$0xf]
        %v560 = vld [vmem:[#allocation10 + $0x10] sm:$0xf]
        %v561 = vld [vmem:[#allocation10 + $0x14] sm:$0xf]
        %v562 = vld [vmem:[#allocation10 + $0x18] sm:$0xf]
        %v563 = vld [vmem:[#allocation10 + $0x1c] sm:$0xf]
        %v564 = vld [vmem:[#allocation10 + $0x20] sm:$0xf]
        %v565 = vld [vmem:[#allocation10 + $0x24] sm:$0xf]
        %v566 = vld [vmem:[#allocation10 + $0x28] sm:$0xf]
        %v567 = vld [vmem:[#allocation10 + $0x2c] sm:$0xf]
        %v568 = vld [vmem:[#allocation10 + $0x30] sm:$0xf]
        %v569 = vld [vmem:[#allocation10 + $0x34] sm:$0xf]
        %v570 = vld [vmem:[#allocation10 + $0x38] sm:$0xf]
        %v571 = vld [vmem:[#allocation10 + $0x3c] sm:$0xf]
        %v572 = vld [vmem:[%s5] sm:$0x1]
        %v574 = vlaneseq
        %v575 = vshrl.u32 %v574, 7
        %v576 = vsub.s32 0, %v575
        %v577 = vrot.slane %v572, %v576
        %v595 = vunpack.c.l.b16 %v556
        %v596 = vunpack.c.l.b16 %v557
        %v597 = vunpack.c.l.b16 %v558
        %v598 = vunpack.c.l.b16 %v559
        %v599 = vunpack.c.l.b16 %v560
        %v600 = vunpack.c.l.b16 %v561
        %v601 = vunpack.c.l.b16 %v562
        %v602 = vunpack.c.l.b16 %v563
        %v603 = vunpack.c.l.b16 %v564
        %v604 = vunpack.c.l.b16 %v565
        %v605 = vunpack.c.l.b16 %v566
        %v606 = vunpack.c.l.b16 %v567
        %v607 = vunpack.c.l.b16 %v568
        %v608 = vunpack.c.l.b16 %v569
        %v609 = vunpack.c.l.b16 %v570
        %v610 = vunpack.c.l.b16 %v571
        %v611 = vpack.c.b16 %v596, %v595
        %v612 = vpack.c.b16 %v598, %v597
        %v613 = vpack.c.b16 %v600, %v599
        %v614 = vpack.c.b16 %v602, %v601
        %v615 = vpack.c.b16 %v604, %v603
        %v616 = vpack.c.b16 %v606, %v605
        %v617 = vpack.c.b16 %v608, %v607
        %v618 = vpack.c.b16 %v610, %v609
        %627 = vmatprep.subr.bf16.mxu0 0
        %628 = vmatpush1.bf16.msra.mxu0 %v611
        %629 = vmatprep.subr.bf16.mxu0 0
        %630 = vmatpush1.bf16.msra.mxu0 %v612
        %631 = vmatprep.subr.bf16.mxu0 0
        %632 = vmatpush1.bf16.msra.mxu0 %v613
        %633 = vmatprep.subr.bf16.mxu0 0
        %634 = vmatpush1.bf16.msra.mxu0 %v614
        %635 = vmatprep.subr.bf16.mxu0 0
        %636 = vmatpush1.bf16.msra.mxu0 %v615
        %637 = vmatprep.subr.bf16.mxu0 0
        %638 = vmatpush1.bf16.msra.mxu0 %v616
        %639 = vmatprep.subr.bf16.mxu0 0
        %640 = vmatpush1.bf16.msra.mxu0 %v617
        %641 = vmatprep.subr.bf16.mxu0 0
        %642 = vmatpush1.bf16.msra.mxu0 %v618
        %643 = vmatprep.subr.bf16.mxu0 0
        %644 = vmatpush1.bf16.msra.mxu0 0
        %645 = vmatprep.subr.bf16.mxu0 0
        %646 = vmatpush1.bf16.msra.mxu0 0
        %647 = vmatprep.subr.bf16.mxu0 0
        %648 = vmatpush1.bf16.msra.mxu0 0
        %649 = vmatprep.subr.bf16.mxu0 0
        %650 = vmatpush1.bf16.msra.mxu0 0
        %651 = vmatprep.subr.bf16.mxu0 0
        %652 = vmatpush1.bf16.msra.mxu0 0
        %653 = vmatprep.subr.bf16.mxu0 0
        %654 = vmatpush1.bf16.msra.mxu0 0
        %655 = vmatprep.subr.bf16.mxu0 0
        %656 = vmatpush1.bf16.msra.mxu0 0
        %657 = vmatprep.subr.bf16.mxu0 0
        %658 = vmatpush1.bf16.msra.mxu0 0
        %659 = vmatprep.mubr.bf16.mxu0 0
        %660 = vmatmul.mubr.bf16.gmra.mrb[0].mxu0 %v552
        %v661 = vpop.f32.mrb[0].mxu0
        %v662 = vadd.f32 %v577, %v661
        %v663 = vpop.f32.mrb[0].mxu0
        %v664 = vpop.f32.mrb[0].mxu0
        %v665 = vpop.f32.mrb[0].mxu0
        %666 = vdwg.mxu0
        %v667 = vadd.f32 %v662, %v555
        %v668 = vmul.f32 %v667, 0.70710677
        %v669 = vpack.c.bf16 %v668, %v668
        %v670 = vld [vmem:[%s477] sm:$0xf]
        %v671 = vld [vmem:[%s477 + $0x4] sm:$0xf]
        %v672 = vld [vmem:[%s477 + $0x8] sm:$0xf]
        %v673 = vld [vmem:[%s477 + $0xc] sm:$0xf]
        %v674 = vld [vmem:[%s477 + $0x10] sm:$0xf]
        %v675 = vld [vmem:[%s477 + $0x14] sm:$0xf]
        %v676 = vld [vmem:[%s477 + $0x18] sm:$0xf]
        %v677 = vld [vmem:[%s477 + $0x1c] sm:$0xf]
        %v678 = vld [vmem:[%s477 + $0x20] sm:$0xf]
        %v679 = vld [vmem:[%s477 + $0x24] sm:$0xf]
        %v680 = vld [vmem:[%s477 + $0x28] sm:$0xf]
        %v681 = vld [vmem:[%s477 + $0x2c] sm:$0xf]
        %v682 = vld [vmem:[%s477 + $0x30] sm:$0xf]
        %v683 = vld [vmem:[%s477 + $0x34] sm:$0xf]
        %v684 = vld [vmem:[%s477 + $0x38] sm:$0xf]
        %v685 = vld [vmem:[%s477 + $0x3c] sm:$0xf]
        %v686 = vld [vmem:[%s8] sm:$0x1]
        %v688 = vlaneseq
        %v689 = vshrl.u32 %v688, 7
        %v690 = vsub.s32 0, %v689
        %v691 = vrot.slane %v686, %v690
        %v709 = vunpack.c.l.b16 %v670
        %v710 = vunpack.c.l.b16 %v671
        %v711 = vunpack.c.l.b16 %v672
        %v712 = vunpack.c.l.b16 %v673
        %v713 = vunpack.c.l.b16 %v674
        %v714 = vunpack.c.l.b16 %v675
        %v715 = vunpack.c.l.b16 %v676
        %v716 = vunpack.c.l.b16 %v677
        %v717 = vunpack.c.l.b16 %v678
        %v718 = vunpack.c.l.b16 %v679
        %v719 = vunpack.c.l.b16 %v680
        %v720 = vunpack.c.l.b16 %v681
        %v721 = vunpack.c.l.b16 %v682
        %v722 = vunpack.c.l.b16 %v683
        %v723 = vunpack.c.l.b16 %v684
        %v724 = vunpack.c.l.b16 %v685
        %v725 = vpack.c.b16 %v710, %v709
        %v726 = vpack.c.b16 %v712, %v711
        %v727 = vpack.c.b16 %v714, %v713
        %v728 = vpack.c.b16 %v716, %v715
        %v729 = vpack.c.b16 %v718, %v717
        %v730 = vpack.c.b16 %v720, %v719
        %v731 = vpack.c.b16 %v722, %v721
        %v732 = vpack.c.b16 %v724, %v723
        %741 = vmatprep.subr.bf16.mxu0 0
        %742 = vmatpush1.bf16.msra.mxu0 %v725
        %743 = vmatprep.subr.bf16.mxu0 0
        %744 = vmatpush1.bf16.msra.mxu0 %v726
        %745 = vmatprep.subr.bf16.mxu0 0
        %746 = vmatpush1.bf16.msra.mxu0 %v727
        %747 = vmatprep.subr.bf16.mxu0 0
        %748 = vmatpush1.bf16.msra.mxu0 %v728
        %749 = vmatprep.subr.bf16.mxu0 0
        %750 = vmatpush1.bf16.msra.mxu0 %v729
        %751 = vmatprep.subr.bf16.mxu0 0
        %752 = vmatpush1.bf16.msra.mxu0 %v730
        %753 = vmatprep.subr.bf16.mxu0 0
        %754 = vmatpush1.bf16.msra.mxu0 %v731
        %755 = vmatprep.subr.bf16.mxu0 0
        %756 = vmatpush1.bf16.msra.mxu0 %v732
        %757 = vmatprep.subr.bf16.mxu0 0
        %758 = vmatpush1.bf16.msra.mxu0 0
        %759 = vmatprep.subr.bf16.mxu0 0
        %760 = vmatpush1.bf16.msra.mxu0 0
        %761 = vmatprep.subr.bf16.mxu0 0
        %762 = vmatpush1.bf16.msra.mxu0 0
        %763 = vmatprep.subr.bf16.mxu0 0
        %764 = vmatpush1.bf16.msra.mxu0 0
        %765 = vmatprep.subr.bf16.mxu0 0
        %766 = vmatpush1.bf16.msra.mxu0 0
        %767 = vmatprep.subr.bf16.mxu0 0
        %768 = vmatpush1.bf16.msra.mxu0 0
        %769 = vmatprep.subr.bf16.mxu0 0
        %770 = vmatpush1.bf16.msra.mxu0 0
        %771 = vmatprep.subr.bf16.mxu0 0
        %772 = vmatpush1.bf16.msra.mxu0 0
        %773 = vmatprep.mubr.bf16.mxu0 0
        %774 = vmatmul.mubr.bf16.gmra.mrb[0].mxu0 %v669
        %v775 = vpop.f32.mrb[0].mxu0
        %v776 = vadd.f32 %v691, %v775
        %v777 = vpop.f32.mrb[0].mxu0
        %v778 = vpop.f32.mrb[0].mxu0
        %v779 = vpop.f32.mrb[0].mxu0
        %780 = vdwg.mxu0
        %781 = vmax.xlane.f32.xlu0 %v776
        %v782 = vpop.xlane.xlu0 %781
        %v783 = vsub.f32 %v776, %v782
        %v784 = vmul.f32 %v783, 1.442695
        %v785 = vpow.pop %v784
        %786 = vadd.xlane.f32.xlu0 %v785
        %v787 = vpop.xlane.xlu0 %786
        %v788 = vrcp.pop %v787
        %v789 = vmul.f32 %v785, %v788
        %790 = vst [vmem:[%s550] sm:$0xff] %v789
        %v791 = vpack.c.bf16 %v789, %v789
        %v792 = vld [vmem:[%s486] sm:$0xf]
        %v793 = vld [vmem:[%s486 + $0x4] sm:$0xf]
        %v794 = vld [vmem:[%s486 + $0x8] sm:$0xf]
        %v795 = vld [vmem:[%s486 + $0xc] sm:$0xf]
        %v796 = vld [vmem:[%s486 + $0x10] sm:$0xf]
        %v797 = vld [vmem:[%s486 + $0x14] sm:$0xf]
        %v798 = vld [vmem:[%s486 + $0x18] sm:$0xf]
        %v799 = vld [vmem:[%s486 + $0x1c] sm:$0xf]
        %v800 = vld [vmem:[%s486 + $0x20] sm:$0xf]
        %v801 = vld [vmem:[%s486 + $0x24] sm:$0xf]
        %v802 = vld [vmem:[%s486 + $0x28] sm:$0xf]
        %v803 = vld [vmem:[%s486 + $0x2c] sm:$0xf]
        %v804 = vld [vmem:[%s486 + $0x30] sm:$0xf]
        %v805 = vld [vmem:[%s486 + $0x34] sm:$0xf]
        %v806 = vld [vmem:[%s486 + $0x38] sm:$0xf]
        %v807 = vld [vmem:[%s486 + $0x3c] sm:$0xf]
        %v824 = vunpack.c.l.b16 %v792
        %v825 = vunpack.c.l.b16 %v793
        %v826 = vunpack.c.l.b16 %v794
        %v827 = vunpack.c.l.b16 %v795
        %v828 = vunpack.c.l.b16 %v796
        %v829 = vunpack.c.l.b16 %v797
        %v830 = vunpack.c.l.b16 %v798
        %v831 = vunpack.c.l.b16 %v799
        %v832 = vunpack.c.l.b16 %v800
        %v833 = vunpack.c.l.b16 %v801
        %v834 = vunpack.c.l.b16 %v802
        %v835 = vunpack.c.l.b16 %v803
        %v836 = vunpack.c.l.b16 %v804
        %v837 = vunpack.c.l.b16 %v805
        %v838 = vunpack.c.l.b16 %v806
        %v839 = vunpack.c.l.b16 %v807
        %v840 = vpack.c.b16 %v825, %v824
        %v841 = vpack.c.b16 %v827, %v826
        %v842 = vpack.c.b16 %v829, %v828
        %v843 = vpack.c.b16 %v831, %v830
        %v844 = vpack.c.b16 %v833, %v832
        %v845 = vpack.c.b16 %v835, %v834
        %v846 = vpack.c.b16 %v837, %v836
        %v847 = vpack.c.b16 %v839, %v838
        %856 = vmatprep.subr.bf16.mxu0 0
        %857 = vmatpush1.bf16.msra.mxu0 %v840
        %858 = vmatprep.subr.bf16.mxu0 0
        %859 = vmatpush1.bf16.msra.mxu0 %v841
        %860 = vmatprep.subr.bf16.mxu0 0
        %861 = vmatpush1.bf16.msra.mxu0 %v842
        %862 = vmatprep.subr.bf16.mxu0 0
        %863 = vmatpush1.bf16.msra.mxu0 %v843
        %864 = vmatprep.subr.bf16.mxu0 0
        %865 = vmatpush1.bf16.msra.mxu0 %v844
        %866 = vmatprep.subr.bf16.mxu0 0
        %867 = vmatpush1.bf16.msra.mxu0 %v845
        %868 = vmatprep.subr.bf16.mxu0 0
        %869 = vmatpush1.bf16.msra.mxu0 %v846
        %870 = vmatprep.subr.bf16.mxu0 0
        %871 = vmatpush1.bf16.msra.mxu0 %v847
        %872 = vmatprep.subr.bf16.mxu0 0
        %873 = vmatpush1.bf16.msra.mxu0 0
        %874 = vmatprep.subr.bf16.mxu0 0
        %875 = vmatpush1.bf16.msra.mxu0 0
        %876 = vmatprep.subr.bf16.mxu0 0
        %877 = vmatpush1.bf16.msra.mxu0 0
        %878 = vmatprep.subr.bf16.mxu0 0
        %879 = vmatpush1.bf16.msra.mxu0 0
        %880 = vmatprep.subr.bf16.mxu0 0
        %881 = vmatpush1.bf16.msra.mxu0 0
        %882 = vmatprep.subr.bf16.mxu0 0
        %883 = vmatpush1.bf16.msra.mxu0 0
        %884 = vmatprep.subr.bf16.mxu0 0
        %885 = vmatpush1.bf16.msra.mxu0 0
        %886 = vmatprep.subr.bf16.mxu0 0
        %887 = vmatpush1.bf16.msra.mxu0 0
        %888 = vmatprep.mubr.bf16.mxu0 0
        %889 = vmatmul.mubr.bf16.gmra.mrb[0].mxu0 %v791
        %v890 = vpop.f32.mrb[0].mxu0
        %v891 = vadd.f32 0.0, %v890
        %v892 = vpop.f32.mrb[0].mxu0
        %v893 = vpop.f32.mrb[0].mxu0
        %v894 = vpop.f32.mrb[0].mxu0
        %895 = vdwg.mxu0
        %v896 = vpack.c.bf16 %v891, %v891
        %v897 = vld [vmem:[#allocation11] sm:$0xf]
        %v898 = vld [vmem:[#allocation11 + $0x4] sm:$0xf]
        %v899 = vld [vmem:[#allocation11 + $0x8] sm:$0xf]
        %v900 = vld [vmem:[#allocation11 + $0xc] sm:$0xf]
        %v901 = vld [vmem:[#allocation11 + $0x10] sm:$0xf]
        %v902 = vld [vmem:[#allocation11 + $0x14] sm:$0xf]
        %v903 = vld [vmem:[#allocation11 + $0x18] sm:$0xf]
        %v904 = vld [vmem:[#allocation11 + $0x1c] sm:$0xf]
        %v905 = vld [vmem:[#allocation11 + $0x20] sm:$0xf]
        %v906 = vld [vmem:[#allocation11 + $0x24] sm:$0xf]
        %v907 = vld [vmem:[#allocation11 + $0x28] sm:$0xf]
        %v908 = vld [vmem:[#allocation11 + $0x2c] sm:$0xf]
        %v909 = vld [vmem:[#allocation11 + $0x30] sm:$0xf]
        %v910 = vld [vmem:[#allocation11 + $0x34] sm:$0xf]
        %v911 = vld [vmem:[#allocation11 + $0x38] sm:$0xf]
        %v912 = vld [vmem:[#allocation11 + $0x3c] sm:$0xf]
        %v913 = vld [vmem:[%s7] sm:$0x1]
        %v915 = vlaneseq
        %v916 = vshrl.u32 %v915, 7
        %v917 = vsub.s32 0, %v916
        %v918 = vrot.slane %v913, %v917
        %v936 = vunpack.c.l.b16 %v897
        %v937 = vunpack.c.l.b16 %v898
        %v938 = vunpack.c.l.b16 %v899
        %v939 = vunpack.c.l.b16 %v900
        %v940 = vunpack.c.l.b16 %v901
        %v941 = vunpack.c.l.b16 %v902
        %v942 = vunpack.c.l.b16 %v903
        %v943 = vunpack.c.l.b16 %v904
        %v944 = vunpack.c.l.b16 %v905
        %v945 = vunpack.c.l.b16 %v906
        %v946 = vunpack.c.l.b16 %v907
        %v947 = vunpack.c.l.b16 %v908
        %v948 = vunpack.c.l.b16 %v909
        %v949 = vunpack.c.l.b16 %v910
        %v950 = vunpack.c.l.b16 %v911
        %v951 = vunpack.c.l.b16 %v912
        %v952 = vpack.c.b16 %v937, %v936
        %v953 = vpack.c.b16 %v939, %v938
        %v954 = vpack.c.b16 %v941, %v940
        %v955 = vpack.c.b16 %v943, %v942
        %v956 = vpack.c.b16 %v945, %v944
        %v957 = vpack.c.b16 %v947, %v946
        %v958 = vpack.c.b16 %v949, %v948
        %v959 = vpack.c.b16 %v951, %v950
        %968 = vmatprep.subr.bf16.mxu0 0
        %969 = vmatpush1.bf16.msra.mxu0 %v952
        %970 = vmatprep.subr.bf16.mxu0 0
        %971 = vmatpush1.bf16.msra.mxu0 %v953
        %972 = vmatprep.subr.bf16.mxu0 0
        %973 = vmatpush1.bf16.msra.mxu0 %v954
        %974 = vmatprep.subr.bf16.mxu0 0
        %975 = vmatpush1.bf16.msra.mxu0 %v955
        %976 = vmatprep.subr.bf16.mxu0 0
        %977 = vmatpush1.bf16.msra.mxu0 %v956
        %978 = vmatprep.subr.bf16.mxu0 0
        %979 = vmatpush1.bf16.msra.mxu0 %v957
        %980 = vmatprep.subr.bf16.mxu0 0
        %981 = vmatpush1.bf16.msra.mxu0 %v958
        %982 = vmatprep.subr.bf16.mxu0 0
        %983 = vmatpush1.bf16.msra.mxu0 %v959
        %984 = vmatprep.subr.bf16.mxu0 0
        %985 = vmatpush1.bf16.msra.mxu0 0
        %986 = vmatprep.subr.bf16.mxu0 0
        %987 = vmatpush1.bf16.msra.mxu0 0
        %988 = vmatprep.subr.bf16.mxu0 0
        %989 = vmatpush1.bf16.msra.mxu0 0
        %990 = vmatprep.subr.bf16.mxu0 0
        %991 = vmatpush1.bf16.msra.mxu0 0
        %992 = vmatprep.subr.bf16.mxu0 0
        %993 = vmatpush1.bf16.msra.mxu0 0
        %994 = vmatprep.subr.bf16.mxu0 0
        %995 = vmatpush1.bf16.msra.mxu0 0
        %996 = vmatprep.subr.bf16.mxu0 0
        %997 = vmatpush1.bf16.msra.mxu0 0
        %998 = vmatprep.subr.bf16.mxu0 0
        %999 = vmatpush1.bf16.msra.mxu0 0
        %1000 = vmatprep.mubr.bf16.mxu0 0
        %1001 = vmatmul.mubr.bf16.gmra.mrb[0].mxu0 %v896
        %v1002 = vpop.f32.mrb[0].mxu0
        %v1003 = vadd.f32 %v918, %v1002
        %v1004 = vpop.f32.mrb[0].mxu0
        %v1005 = vpop.f32.mrb[0].mxu0
        %v1006 = vpop.f32.mrb[0].mxu0
        %1007 = vdwg.mxu0
        %v1008 = vadd.f32 %v1003, %v553
        %v1009 = vmul.f32 %v1008, 0.70710677
        %1010 = vst [vmem:[%s543] sm:$0xff] %v1009
        %s1011 = sand.u32 %s273, 1
        %s1012 = scalar_lea.sflag [#allocation4], %s1011
        %s1013 = sand.u32 %s273, 1
        %s1014 = smul.addr %s1013, 8
        %s1015 = scalar_lea.vmem [#allocation13], %s1014
        %s1016 = sand.u32 %s301, 1
        %s1017 = scalar_lea.sflag [#allocation15], %s1016
        %s1018 = sand.u32 %s301, 1
        %s1019 = smul.addr %s1018, 8
        %s1020 = scalar_lea.vmem [#allocation14], %s1019
        // Predicated region
        $region81: #{tpu_custom_call.1} parent=55 // pred_check
          %p1021 = pneg %p283
        $region82: #{tpu_custom_call.1} parent=55 // pred_check_branch
          %1023 = sbr.rel (%p1021) target = $region84
        $region83: #{tpu_custom_call.1} parent=55 // pred_region
          %s1025 = ssub.s32 128, 128
          %1026 = vsyncadd %s1012, %s1025
          %s1027 = sadd.s32 %s43, %s42
          %s1028 = smul.addr %s1027, 128
          %s1029 = scalar_lea.hbm %s9, %s1028
          %s1031 = sshll.u32 %s1015, 4
          %s1032 = int_to_ptr.vmem [resolvable:$true] %s1031
          %1034 = dma.vmem_to_hbm [thread:$0]  %s1032, 128, %s1029, %s1012
        $region84: #{tpu_custom_call.1} parent=55 // pred_fallthru
          _
        // Predicated region
        $region85: #{tpu_custom_call.1} parent=55 // pred_check
          %p1035 = pneg %p311
        $region86: #{tpu_custom_call.1} parent=55 // pred_check_branch
          %1037 = sbr.rel (%p1035) target = $region88
        $region87: #{tpu_custom_call.1} parent=55 // pred_region
          %s1039 = ssub.s32 128, 128
          %1040 = vsyncadd %s1017, %s1039
          %s1041 = sadd.s32 %s43, %s42
          %s1042 = smul.addr %s1041, 128
          %s1043 = scalar_lea.hbm %s10, %s1042
          %s1045 = sshll.u32 %s1020, 4
          %s1046 = int_to_ptr.vmem [resolvable:$true] %s1045
          %1048 = dma.vmem_to_hbm [thread:$0]  %s1046, 128, %s1043, %s1017
        $region88: #{tpu_custom_call.1} parent=55 // pred_fallthru
          _
      $region56: #{tpu_custom_call.1} parent=5 // pred_fallthru
        _
      %p1049 = scmp.le.s32.totalorder 2, %s33
      // Predicated region
      $region89: #{tpu_custom_call.1} parent=5 // pred_check
        %p1050 = pneg %p1049
      $region90: #{tpu_custom_call.1} parent=5 // pred_check_branch
        %1052 = sbr.rel (%p1050) target = $region92
      $region91: #{tpu_custom_call.1} parent=5 // pred_region
        %s1053 = ssub.s32 %s33, 2
        // Predicated region
        $region93: #{tpu_custom_call.1} parent=91 // pred_check
          %p1054 = pneg %p289
        $region94: #{tpu_custom_call.1} parent=91 // pred_check_branch
          %1056 = sbr.rel (%p1054) target = $region96
        $region95: #{tpu_custom_call.1} parent=91 // pred_region
          %s1057 = sand.u32 %s274, 1
          %s1058 = scalar_lea.sflag [#allocation4], %s1057
          %s1059 = sand.u32 %s274, 1
          %s1060 = smul.addr %s1059, 8
          %s1061 = scalar_lea.vmem [#allocation13], %s1060
          %1062 = dma.done %s1058, 128
        $region96: #{tpu_custom_call.1} parent=91 // pred_fallthru
          _
        // Predicated region
        $region97: #{tpu_custom_call.1} parent=91 // pred_check
          %p1063 = pneg %p317
        $region98: #{tpu_custom_call.1} parent=91 // pred_check_branch
          %1065 = sbr.rel (%p1063) target = $region100
        $region99: #{tpu_custom_call.1} parent=91 // pred_region
          %s1066 = sand.u32 %s302, 1
          %s1067 = scalar_lea.sflag [#allocation15], %s1066
          %s1068 = sand.u32 %s302, 1
          %s1069 = smul.addr %s1068, 8
          %s1070 = scalar_lea.vmem [#allocation14], %s1069
          %1071 = dma.done %s1067, 128
        $region100: #{tpu_custom_call.1} parent=91 // pred_fallthru
          _
      $region92: #{tpu_custom_call.1} parent=5 // pred_fallthru
        _
    $region6: #{tpu_custom_call.1} parent=1 // loop_footer
      %s37 = sadd.s32 1, %s33
    $region7: #{tpu_custom_call.1} parent=1 // loop_footer_branch
      %32 = sbr.rel target = $region3
    $region8: #{tpu_custom_call.1} parent=1 // loop_exit
      _
    %1072 = vsyncpa [#allocation3], 1
    %s1073 = scalar_lea.sflag [#allocation3], 1
    %1074 = vsyncpa %s1073, 1
    %1075 = vsyncpa [#allocation6], 1
    %s1076 = scalar_lea.sflag [#allocation6], 1
    %1077 = vsyncpa %s1076, 1
    %1078 = vsyncpa [#allocation9], 1
    %s1079 = scalar_lea.sflag [#allocation9], 1
    %1080 = vsyncpa %s1079, 1
    %1081 = vsyncpa [#allocation12], 1
    %1082 = vsyncpa [#allocation4], 1
    %s1083 = scalar_lea.sflag [#allocation4], 1
    %1084 = vsyncpa %s1083, 1
    %1085 = vsyncpa [#allocation15], 1
    %s1086 = scalar_lea.sflag [#allocation15], 1
    %1087 = vsyncpa %s1086, 1

</llo_original>
